<compile_context>
chip_gen: v7x
topology: tpu7x:2x2x1
jax: 0.10.0
libtpu: 0.0.40
codegen_flags: <defaults>
</compile_context>

<pallas_src>
import numpy as np
import jax
import jax.numpy as jnp
from jax import lax
from jax.experimental import pallas as pl
from jax.experimental.pallas import tpu as pltpu


# ----------------------------------------------------------------------------
# Pallas kernel: full L-level MMF recursion + reconstruction, one invocation.
# ----------------------------------------------------------------------------
def _make_mmf_kernel(L, N, P):
    f32 = jnp.float32
    bf16 = jnp.bfloat16

    def feed(x):
        # Explicit MXU operand dtype: bf16 feed, f32 accumulation (matches the
        # implicit DEFAULT-precision truncation, but deliberate and cheaper in
        # vregs / VMEM loads).
        return x.astype(bf16)

    def mmf_kernel(a_ref, u_ref, mask_ref,           # inputs: (N,N),(L,N,N),(N,N)
                   arec_ref, right_ref, d_ref,       # outputs: (N,N) f32 each
                   a_pad, right_pad, stage):         # scratch: (P,P) f32 each
        # Zero-bordered lane-dense staging tiles.  Correctness of the padded
        # compute relies on the border of every padded operand being ZERO (not
        # identity): zero rows/cols propagate exactly through the whole
        # U / A / right / D / A_rec chain, so the [:N,:N] corner of every
        # result is exact.  The border is never written after this point.
        zeros = jnp.zeros((P, P), f32)
        a_pad[...] = zeros
        stage[...] = zeros
        a_pad[0:N, 0:N] = a_ref[...]

        # Levels 0..L-1, fully unrolled (L is small and static).
        for l in range(L):
            stage[0:N, 0:N] = u_ref[l]               # padded U_l (zero border)
            Ub = feed(stage[...])

            # B = U @ A   (first matmul of the dependent A-chain)
            B = jnp.dot(Ub, feed(a_pad[...]), preferred_element_type=f32)

            # right-chain is independent of B; issue it between the two
            # dependent A-chain matmuls so MXU pushes keep flowing.
            if l == 0:
                right_pad[...] = stage[...]           # right <- U_0 (padded)
            else:
                right_pad[...] = jnp.dot(Ub, feed(right_pad[...]),
                                         preferred_element_type=f32)

            # A = B @ U^T  (transpose folded into the contraction dims,
            # no materialized U.T on the MXU feed path)
            a_pad[...] = lax.dot_general(
                feed(B), Ub, (((1,), (1,)), ((), ())),
                preferred_element_type=f32)

        # D = A * left_index  (mask staged into the zero-bordered tile; border
        # of the mask stays zero, so padded D is exact).
        stage[0:N, 0:N] = mask_ref[...]
        D = a_pad[...] * stage[...]
        d_ref[...] = D[0:N, 0:N]

        right_ref[...] = right_pad[0:N, 0:N]

        # A_rec = right^T @ D @ right  (left transpose folded into dims).
        Rb = feed(right_pad[...])
        RtD = lax.dot_general(Rb, feed(D), (((0,), (0,)), ((), ())),
                              preferred_element_type=f32)
        arec_ref[...] = jnp.dot(feed(RtD), Rb,
                                preferred_element_type=f32)[0:N, 0:N]

    return mmf_kernel


def sparse_mmf_forward_pallas(A_dense, U_stack, left_index):
    N = A_dense.shape[0]
    L = U_stack.shape[0]
    P = 128                      # lane-dense in-kernel working tile
    assert N <= P, "dense single-tile path assumes N <= 128"

    vmem = pl.BlockSpec(memory_space=pltpu.MemorySpace.VMEM)
    out_shape = (
        jax.ShapeDtypeStruct((N, N), jnp.float32),   # A_rec
        jax.ShapeDtypeStruct((N, N), jnp.float32),   # right
        jax.ShapeDtypeStruct((N, N), jnp.float32),   # D
    )
    return pl.pallas_call(
        _make_mmf_kernel(L, N, P),
        out_shape=out_shape,
        in_specs=[vmem, vmem, vmem],
        out_specs=(vmem, vmem, vmem),
        scratch_shapes=[pltpu.VMEM((P, P), jnp.float32),   # padded A
                        pltpu.VMEM((P, P), jnp.float32),   # padded right
                        pltpu.VMEM((P, P), jnp.float32)],  # staging (U_l / mask)
    )(A_dense.astype(jnp.float32), U_stack.astype(jnp.float32),
      left_index.astype(jnp.float32))


def sparse_mmf_forward(A_dense, U_stack, left_index, zero_idx, one_idx):
    """Full forward: kernel + static-index gathers (the boolean-mask reshapes
    of the torch module are static given the index schedule)."""
    A_rec, right, D = sparse_mmf_forward_pallas(A_dense, U_stack, left_index)
    zi = jnp.asarray(zero_idx)
    oi = jnp.asarray(one_idx)
    mother_coefficients = D[jnp.ix_(zi, zi)]
    father_coefficients = D[jnp.ix_(oi, oi)]
    mother_wavelets = right[zi]
    father_wavelets = right[oi]
    return (A_rec, right, D, mother_coefficients, father_coefficients,
            mother_wavelets, father_wavelets)


# ----------------------------------------------------------------------------
# Glue: deterministic parameter construction (mirrors Sparse_MMF.__init__
# shapes) and a pure-JAX reference in the same numerics regime as the kernel.
# ----------------------------------------------------------------------------
def build_dense_U(O_l, indices, N):
    """Densify the sparse rotation U: identity outside `indices`, O_l block at
    rows/cols `indices` (same semantics as the torch.sparse construction)."""
    idx = jnp.array(indices, dtype=jnp.int32)
    sel = jnp.zeros((N,), jnp.float32).at[idx].set(1.0)
    U = jnp.diag(1.0 - sel)
    U = U.at[jnp.ix_(idx, idx)].set(O_l)
    return U


def make_problem(key, N, L, K, drop):
    # Symmetric A_dense.
    k_a, k_o = jax.random.split(key)
    X = jax.random.normal(k_a, (N, N), jnp.float32)
    A_dense = X + X.T

    # Deterministic index schedule: level l uses indices range(l*drop, l*drop+K);
    # the first `drop` of them are that level's wavelet indices.
    wavelet_indices, rest_indices = [], []
    for l in range(L):
        idx = list(range(l * drop, l * drop + K))
        wavelet_indices.append(idx[:drop])
        rest_indices.append(idx[drop:])

    # Learnable K x K rotation blocks.
    # TODO(synk): torch.eig-based initialization is init-time only and is not
    # reproduced; O_l are deterministic orthogonal matrices instead.
    o_keys = jax.random.split(k_o, L)
    O_list = []
    for l in range(L):
        M = jax.random.normal(o_keys[l], (K, K), jnp.float32)
        Q, _ = jnp.linalg.qr(M)
        O_list.append(Q.astype(jnp.float32))

    # Dense per-level rotations, stacked.
    U_stack = jnp.stack(
        [build_dense_U(O_list[l], sorted(wavelet_indices[l] + rest_indices[l]), N)
         for l in range(L)], axis=0)

    # active_index after the loop (static, since the schedule is static).
    active = np.ones((N,), np.float32)
    for l in range(L):
        active[np.array(wavelet_indices[l])] = 0.0
    active_j = jnp.asarray(active)

    # left_index = outer(active, active) with diagonal forced to 1.
    eye = jnp.eye(N, dtype=jnp.float32)
    outer = jnp.outer(active_j, active_j)
    left_index = outer * (1.0 - eye) + eye

    zero_idx = np.where(active == 0.0)[0]   # "mother" rows/cols
    one_idx = np.where(active == 1.0)[0]    # "father" rows/cols
    return A_dense, U_stack, left_index, zero_idx, one_idx


def reference_forward(A_dense, U_stack, left_index):
    """Pure-JAX reference in the same explicit numerics regime as the kernel
    (bf16 MXU operand feeds, f32 accumulation, f32 carried state)."""
    bf16, f32 = jnp.bfloat16, jnp.float32

    def mm(x, y):
        return jnp.dot(x.astype(bf16), y.astype(bf16),
                       preferred_element_type=f32)

    A = A_dense.astype(f32)
    right = None
    for l in range(U_stack.shape[0]):
        U = U_stack[l].astype(f32)
        right = U if l == 0 else mm(U, right)
        A = mm(mm(U, A), U.T)
    D = A * left_index
    A_rec = mm(mm(right.T, D), right)
    return A_rec, right, D


if __name__ == "__main__":
    # Small, consistent shapes: N=32, L=4, K=8, drop=2 -> dim = N - L*drop = 24.
    N, L, K, drop = 32, 4, 8, 2
    dim = N - L * drop

    key = jax.random.PRNGKey(0)
    A_dense, U_stack, left_index, zero_idx, one_idx = make_problem(key, N, L, K, drop)

    (A_rec, right, D, mother_coefficients, father_coefficients,
     mother_wavelets, father_wavelets) = sparse_mmf_forward(
        A_dense, U_stack, left_index, zero_idx, one_idx)
    jax.block_until_ready((A_rec, right, D, mother_coefficients,
                           father_coefficients, mother_wavelets, father_wavelets))

    assert A_rec.shape == (N, N)
    assert right.shape == (N, N)
    assert D.shape == (N, N)
    assert mother_coefficients.shape == (N - dim, N - dim)
    assert father_coefficients.shape == (dim, dim)
    assert mother_wavelets.shape == (N - dim, N)
    assert father_wavelets.shape == (dim, N)

    # Correctness check vs. pure-JAX reference (same bf16-feed regime).
    A_rec_r, right_r, D_r = reference_forward(A_dense, U_stack, left_index)
    for got, want, name in ((right, right_r, "right"),
                            (D, D_r, "D"),
                            (A_rec, A_rec_r, "A_rec")):
        got_np, want_np = np.asarray(got), np.asarray(want)
        # Loose element-wise tolerance (robust to isolated bf16 rounding-edge
        # divergence) plus a tight aggregate Frobenius-norm check.
        np.testing.assert_allclose(got_np, want_np, rtol=2e-2, atol=2e-2,
                                   err_msg=name)
        rel = np.linalg.norm(got_np - want_np) / max(np.linalg.norm(want_np), 1e-6)
        assert rel < 1e-3, (name, float(rel))

    print("KERNEL_OK")
</pallas_src>

<mosaic_0001>
module attributes {stable_mosaic.version = 11 : i64} {
  func.func @mmf_kernel(%arg0: memref<32x32xf32, #tpu.memory_space<vmem>>, %arg1: memref<4x32x32xf32, #tpu.memory_space<vmem>>, %arg2: memref<32x32xf32, #tpu.memory_space<vmem>>, %arg3: memref<32x32xf32, #tpu.memory_space<vmem>>, %arg4: memref<32x32xf32, #tpu.memory_space<vmem>>, %arg5: memref<32x32xf32, #tpu.memory_space<vmem>>, %arg6: memref<128x128xf32, #tpu.memory_space<vmem>>, %arg7: memref<128x128xf32, #tpu.memory_space<vmem>>, %arg8: memref<128x128xf32, #tpu.memory_space<vmem>>) attributes {dimension_semantics = [], scalar_prefetch = 0 : i64, scratch_operands = 3 : i64, tpu.core_type = #tpu.core_type<tc>} {
    %cst = arith.constant 0.000000e+00 : f32
    %0 = vector.broadcast %cst : f32 to vector<128x128xf32>
    %c0 = arith.constant 0 : index
    %c0_0 = arith.constant 0 : index
    %1 = vector.load %arg6[%c0, %c0_0] : memref<128x128xf32, #tpu.memory_space<vmem>>, vector<128x128xf32>
    tpu.vector_store %arg6[%c0, %c0_0], %0 {strides = array<i32>} : memref<128x128xf32, #tpu.memory_space<vmem>>, vector<128x128xf32>,
    %c0_1 = arith.constant 0 : index
    %c0_2 = arith.constant 0 : index
    %2 = vector.load %arg8[%c0_1, %c0_2] : memref<128x128xf32, #tpu.memory_space<vmem>>, vector<128x128xf32>
    tpu.vector_store %arg8[%c0_1, %c0_2], %0 {strides = array<i32>} : memref<128x128xf32, #tpu.memory_space<vmem>>, vector<128x128xf32>,
    %c0_3 = arith.constant 0 : index
    %c0_4 = arith.constant 0 : index
    %3 = vector.load %arg0[%c0_3, %c0_4] : memref<32x32xf32, #tpu.memory_space<vmem>>, vector<32x32xf32>
    %c0_5 = arith.constant 0 : index
    %c0_6 = arith.constant 0 : index
    %4 = vector.load %arg6[%c0_5, %c0_6] : memref<128x128xf32, #tpu.memory_space<vmem>>, vector<32x32xf32>
    tpu.vector_store %arg6[%c0_5, %c0_6], %3 {strides = array<i32>} : memref<128x128xf32, #tpu.memory_space<vmem>>, vector<32x32xf32>,
    %c0_7 = arith.constant 0 : index
    %c0_8 = arith.constant 0 : index
    %c0_9 = arith.constant 0 : index
    %5 = vector.load %arg1[%c0_7, %c0_8, %c0_9] : memref<4x32x32xf32, #tpu.memory_space<vmem>>, vector<1x32x32xf32>
    %6 = vector.shape_cast %5 : vector<1x32x32xf32> to vector<32x32xf32>
    %c0_10 = arith.constant 0 : index
    %c0_11 = arith.constant 0 : index
    %7 = vector.load %arg8[%c0_10, %c0_11] : memref<128x128xf32, #tpu.memory_space<vmem>>, vector<32x32xf32>
    tpu.vector_store %arg8[%c0_10, %c0_11], %6 {strides = array<i32>} : memref<128x128xf32, #tpu.memory_space<vmem>>, vector<32x32xf32>,
    %c0_12 = arith.constant 0 : index
    %c0_13 = arith.constant 0 : index
    %8 = vector.load %arg8[%c0_12, %c0_13] : memref<128x128xf32, #tpu.memory_space<vmem>>, vector<128x128xf32>
    %9 = arith.truncf %8 : vector<128x128xf32> to vector<128x128xbf16>
    %c0_14 = arith.constant 0 : index
    %c0_15 = arith.constant 0 : index
    %10 = vector.load %arg6[%c0_14, %c0_15] : memref<128x128xf32, #tpu.memory_space<vmem>>, vector<128x128xf32>
    %11 = arith.truncf %10 : vector<128x128xf32> to vector<128x128xbf16>
    %cst_16 = arith.constant dense<0.000000e+00> : vector<128x128xf32>
    %12 = tpu.matmul %9, %11, %cst_16 {dimension_numbers = #tpu.dot_dimension_numbers<[1], [0], [0], [1], [0, 0, 1, 1], [], []>} : vector<128x128xbf16>, vector<128x128xbf16>, vector<128x128xf32> -> vector<128x128xf32>
    %c0_17 = arith.constant 0 : index
    %c0_18 = arith.constant 0 : index
    %13 = vector.load %arg8[%c0_17, %c0_18] : memref<128x128xf32, #tpu.memory_space<vmem>>, vector<128x128xf32>
    %c0_19 = arith.constant 0 : index
    %c0_20 = arith.constant 0 : index
    %14 = vector.load %arg7[%c0_19, %c0_20] : memref<128x128xf32, #tpu.memory_space<vmem>>, vector<128x128xf32>
    tpu.vector_store %arg7[%c0_19, %c0_20], %13 {strides = array<i32>} : memref<128x128xf32, #tpu.memory_space<vmem>>, vector<128x128xf32>,
    %15 = arith.truncf %12 : vector<128x128xf32> to vector<128x128xbf16>
    %cst_21 = arith.constant dense<0.000000e+00> : vector<128x128xf32>
    %16 = tpu.matmul %15, %9, %cst_21 {dimension_numbers = #tpu.dot_dimension_numbers<[1], [1], [0], [0], [0, 0, 1, 0], [], []>} : vector<128x128xbf16>, vector<128x128xbf16>, vector<128x128xf32> -> vector<128x128xf32>
    %c0_22 = arith.constant 0 : index
    %c0_23 = arith.constant 0 : index
    %17 = vector.load %arg6[%c0_22, %c0_23] : memref<128x128xf32, #tpu.memory_space<vmem>>, vector<128x128xf32>
    tpu.vector_store %arg6[%c0_22, %c0_23], %16 {strides = array<i32>} : memref<128x128xf32, #tpu.memory_space<vmem>>, vector<128x128xf32>,
    %c1 = arith.constant 1 : index
    %c0_24 = arith.constant 0 : index
    %c0_25 = arith.constant 0 : index
    %18 = vector.load %arg1[%c1, %c0_24, %c0_25] : memref<4x32x32xf32, #tpu.memory_space<vmem>>, vector<1x32x32xf32>
    %19 = vector.shape_cast %18 : vector<1x32x32xf32> to vector<32x32xf32>
    %c0_26 = arith.constant 0 : index
    %c0_27 = arith.constant 0 : index
    %20 = vector.load %arg8[%c0_26, %c0_27] : memref<128x128xf32, #tpu.memory_space<vmem>>, vector<32x32xf32>
    tpu.vector_store %arg8[%c0_26, %c0_27], %19 {strides = array<i32>} : memref<128x128xf32, #tpu.memory_space<vmem>>, vector<32x32xf32>,
    %c0_28 = arith.constant 0 : index
    %c0_29 = arith.constant 0 : index
    %21 = vector.load %arg8[%c0_28, %c0_29] : memref<128x128xf32, #tpu.memory_space<vmem>>, vector<128x128xf32>
    %22 = arith.truncf %21 : vector<128x128xf32> to vector<128x128xbf16>
    %c0_30 = arith.constant 0 : index
    %c0_31 = arith.constant 0 : index
    %23 = vector.load %arg6[%c0_30, %c0_31] : memref<128x128xf32, #tpu.memory_space<vmem>>, vector<128x128xf32>
    %24 = arith.truncf %23 : vector<128x128xf32> to vector<128x128xbf16>
    %cst_32 = arith.constant dense<0.000000e+00> : vector<128x128xf32>
    %25 = tpu.matmul %22, %24, %cst_32 {dimension_numbers = #tpu.dot_dimension_numbers<[1], [0], [0], [1], [0, 0, 1, 1], [], []>} : vector<128x128xbf16>, vector<128x128xbf16>, vector<128x128xf32> -> vector<128x128xf32>
    %c0_33 = arith.constant 0 : index
    %c0_34 = arith.constant 0 : index
    %26 = vector.load %arg7[%c0_33, %c0_34] : memref<128x128xf32, #tpu.memory_space<vmem>>, vector<128x128xf32>
    %27 = arith.truncf %26 : vector<128x128xf32> to vector<128x128xbf16>
    %cst_35 = arith.constant dense<0.000000e+00> : vector<128x128xf32>
    %28 = tpu.matmul %22, %27, %cst_35 {dimension_numbers = #tpu.dot_dimension_numbers<[1], [0], [0], [1], [0, 0, 1, 1], [], []>} : vector<128x128xbf16>, vector<128x128xbf16>, vector<128x128xf32> -> vector<128x128xf32>
    %c0_36 = arith.constant 0 : index
    %c0_37 = arith.constant 0 : index
    %29 = vector.load %arg7[%c0_36, %c0_37] : memref<128x128xf32, #tpu.memory_space<vmem>>, vector<128x128xf32>
    tpu.vector_store %arg7[%c0_36, %c0_37], %28 {strides = array<i32>} : memref<128x128xf32, #tpu.memory_space<vmem>>, vector<128x128xf32>,
    %30 = arith.truncf %25 : vector<128x128xf32> to vector<128x128xbf16>
    %cst_38 = arith.constant dense<0.000000e+00> : vector<128x128xf32>
    %31 = tpu.matmul %30, %22, %cst_38 {dimension_numbers = #tpu.dot_dimension_numbers<[1], [1], [0], [0], [0, 0, 1, 0], [], []>} : vector<128x128xbf16>, vector<128x128xbf16>, vector<128x128xf32> -> vector<128x128xf32>
    %c0_39 = arith.constant 0 : index
    %c0_40 = arith.constant 0 : index
    %32 = vector.load %arg6[%c0_39, %c0_40] : memref<128x128xf32, #tpu.memory_space<vmem>>, vector<128x128xf32>
    tpu.vector_store %arg6[%c0_39, %c0_40], %31 {strides = array<i32>} : memref<128x128xf32, #tpu.memory_space<vmem>>, vector<128x128xf32>,
    %c2 = arith.constant 2 : index
    %c0_41 = arith.constant 0 : index
    %c0_42 = arith.constant 0 : index
    %33 = vector.load %arg1[%c2, %c0_41, %c0_42] : memref<4x32x32xf32, #tpu.memory_space<vmem>>, vector<1x32x32xf32>
    %34 = vector.shape_cast %33 : vector<1x32x32xf32> to vector<32x32xf32>
    %c0_43 = arith.constant 0 : index
    %c0_44 = arith.constant 0 : index
    %35 = vector.load %arg8[%c0_43, %c0_44] : memref<128x128xf32, #tpu.memory_space<vmem>>, vector<32x32xf32>
    tpu.vector_store %arg8[%c0_43, %c0_44], %34 {strides = array<i32>} : memref<128x128xf32, #tpu.memory_space<vmem>>, vector<32x32xf32>,
    %c0_45 = arith.constant 0 : index
    %c0_46 = arith.constant 0 : index
    %36 = vector.load %arg8[%c0_45, %c0_46] : memref<128x128xf32, #tpu.memory_space<vmem>>, vector<128x128xf32>
    %37 = arith.truncf %36 : vector<128x128xf32> to vector<128x128xbf16>
    %c0_47 = arith.constant 0 : index
    %c0_48 = arith.constant 0 : index
    %38 = vector.load %arg6[%c0_47, %c0_48] : memref<128x128xf32, #tpu.memory_space<vmem>>, vector<128x128xf32>
    %39 = arith.truncf %38 : vector<128x128xf32> to vector<128x128xbf16>
    %cst_49 = arith.constant dense<0.000000e+00> : vector<128x128xf32>
    %40 = tpu.matmul %37, %39, %cst_49 {dimension_numbers = #tpu.dot_dimension_numbers<[1], [0], [0], [1], [0, 0, 1, 1], [], []>} : vector<128x128xbf16>, vector<128x128xbf16>, vector<128x128xf32> -> vector<128x128xf32>
    %c0_50 = arith.constant 0 : index
    %c0_51 = arith.constant 0 : index
    %41 = vector.load %arg7[%c0_50, %c0_51] : memref<128x128xf32, #tpu.memory_space<vmem>>, vector<128x128xf32>
    %42 = arith.truncf %41 : vector<128x128xf32> to vector<128x128xbf16>
    %cst_52 = arith.constant dense<0.000000e+00> : vector<128x128xf32>
    %43 = tpu.matmul %37, %42, %cst_52 {dimension_numbers = #tpu.dot_dimension_numbers<[1], [0], [0], [1], [0, 0, 1, 1], [], []>} : vector<128x128xbf16>, vector<128x128xbf16>, vector<128x128xf32> -> vector<128x128xf32>
    %c0_53 = arith.constant 0 : index
    %c0_54 = arith.constant 0 : index
    %44 = vector.load %arg7[%c0_53, %c0_54] : memref<128x128xf32, #tpu.memory_space<vmem>>, vector<128x128xf32>
    tpu.vector_store %arg7[%c0_53, %c0_54], %43 {strides = array<i32>} : memref<128x128xf32, #tpu.memory_space<vmem>>, vector<128x128xf32>,
    %45 = arith.truncf %40 : vector<128x128xf32> to vector<128x128xbf16>
    %cst_55 = arith.constant dense<0.000000e+00> : vector<128x128xf32>
    %46 = tpu.matmul %45, %37, %cst_55 {dimension_numbers = #tpu.dot_dimension_numbers<[1], [1], [0], [0], [0, 0, 1, 0], [], []>} : vector<128x128xbf16>, vector<128x128xbf16>, vector<128x128xf32> -> vector<128x128xf32>
    %c0_56 = arith.constant 0 : index
    %c0_57 = arith.constant 0 : index
    %47 = vector.load %arg6[%c0_56, %c0_57] : memref<128x128xf32, #tpu.memory_space<vmem>>, vector<128x128xf32>
    tpu.vector_store %arg6[%c0_56, %c0_57], %46 {strides = array<i32>} : memref<128x128xf32, #tpu.memory_space<vmem>>, vector<128x128xf32>,
    %c3 = arith.constant 3 : index
    %c0_58 = arith.constant 0 : index
    %c0_59 = arith.constant 0 : index
    %48 = vector.load %arg1[%c3, %c0_58, %c0_59] : memref<4x32x32xf32, #tpu.memory_space<vmem>>, vector<1x32x32xf32>
    %49 = vector.shape_cast %48 : vector<1x32x32xf32> to vector<32x32xf32>
    %c0_60 = arith.constant 0 : index
    %c0_61 = arith.constant 0 : index
    %50 = vector.load %arg8[%c0_60, %c0_61] : memref<128x128xf32, #tpu.memory_space<vmem>>, vector<32x32xf32>
    tpu.vector_store %arg8[%c0_60, %c0_61], %49 {strides = array<i32>} : memref<128x128xf32, #tpu.memory_space<vmem>>, vector<32x32xf32>,
    %c0_62 = arith.constant 0 : index
    %c0_63 = arith.constant 0 : index
    %51 = vector.load %arg8[%c0_62, %c0_63] : memref<128x128xf32, #tpu.memory_space<vmem>>, vector<128x128xf32>
    %52 = arith.truncf %51 : vector<128x128xf32> to vector<128x128xbf16>
    %c0_64 = arith.constant 0 : index
    %c0_65 = arith.constant 0 : index
    %53 = vector.load %arg6[%c0_64, %c0_65] : memref<128x128xf32, #tpu.memory_space<vmem>>, vector<128x128xf32>
    %54 = arith.truncf %53 : vector<128x128xf32> to vector<128x128xbf16>
    %cst_66 = arith.constant dense<0.000000e+00> : vector<128x128xf32>
    %55 = tpu.matmul %52, %54, %cst_66 {dimension_numbers = #tpu.dot_dimension_numbers<[1], [0], [0], [1], [0, 0, 1, 1], [], []>} : vector<128x128xbf16>, vector<128x128xbf16>, vector<128x128xf32> -> vector<128x128xf32>
    %c0_67 = arith.constant 0 : index
    %c0_68 = arith.constant 0 : index
    %56 = vector.load %arg7[%c0_67, %c0_68] : memref<128x128xf32, #tpu.memory_space<vmem>>, vector<128x128xf32>
    %57 = arith.truncf %56 : vector<128x128xf32> to vector<128x128xbf16>
    %cst_69 = arith.constant dense<0.000000e+00> : vector<128x128xf32>
    %58 = tpu.matmul %52, %57, %cst_69 {dimension_numbers = #tpu.dot_dimension_numbers<[1], [0], [0], [1], [0, 0, 1, 1], [], []>} : vector<128x128xbf16>, vector<128x128xbf16>, vector<128x128xf32> -> vector<128x128xf32>
    %c0_70 = arith.constant 0 : index
    %c0_71 = arith.constant 0 : index
    %59 = vector.load %arg7[%c0_70, %c0_71] : memref<128x128xf32, #tpu.memory_space<vmem>>, vector<128x128xf32>
    tpu.vector_store %arg7[%c0_70, %c0_71], %58 {strides = array<i32>} : memref<128x128xf32, #tpu.memory_space<vmem>>, vector<128x128xf32>,
    %60 = arith.truncf %55 : vector<128x128xf32> to vector<128x128xbf16>
    %cst_72 = arith.constant dense<0.000000e+00> : vector<128x128xf32>
    %61 = tpu.matmul %60, %52, %cst_72 {dimension_numbers = #tpu.dot_dimension_numbers<[1], [1], [0], [0], [0, 0, 1, 0], [], []>} : vector<128x128xbf16>, vector<128x128xbf16>, vector<128x128xf32> -> vector<128x128xf32>
    %c0_73 = arith.constant 0 : index
    %c0_74 = arith.constant 0 : index
    %62 = vector.load %arg6[%c0_73, %c0_74] : memref<128x128xf32, #tpu.memory_space<vmem>>, vector<128x128xf32>
    tpu.vector_store %arg6[%c0_73, %c0_74], %61 {strides = array<i32>} : memref<128x128xf32, #tpu.memory_space<vmem>>, vector<128x128xf32>,
    %c0_75 = arith.constant 0 : index
    %c0_76 = arith.constant 0 : index
    %63 = vector.load %arg2[%c0_75, %c0_76] : memref<32x32xf32, #tpu.memory_space<vmem>>, vector<32x32xf32>
    %c0_77 = arith.constant 0 : index
    %c0_78 = arith.constant 0 : index
    %64 = vector.load %arg8[%c0_77, %c0_78] : memref<128x128xf32, #tpu.memory_space<vmem>>, vector<32x32xf32>
    tpu.vector_store %arg8[%c0_77, %c0_78], %63 {strides = array<i32>} : memref<128x128xf32, #tpu.memory_space<vmem>>, vector<32x32xf32>,
    %c0_79 = arith.constant 0 : index
    %c0_80 = arith.constant 0 : index
    %65 = vector.load %arg6[%c0_79, %c0_80] : memref<128x128xf32, #tpu.memory_space<vmem>>, vector<128x128xf32>
    %c0_81 = arith.constant 0 : index
    %c0_82 = arith.constant 0 : index
    %66 = vector.load %arg8[%c0_81, %c0_82] : memref<128x128xf32, #tpu.memory_space<vmem>>, vector<128x128xf32>
    %67 = arith.mulf %65, %66 : vector<128x128xf32>
    %68 = vector.extract_strided_slice %67 {offsets = [0, 0], sizes = [32, 32], strides = [1, 1]} : vector<128x128xf32> to vector<32x32xf32>
    %c0_83 = arith.constant 0 : index
    %c0_84 = arith.constant 0 : index
    %69 = vector.load %arg5[%c0_83, %c0_84] : memref<32x32xf32, #tpu.memory_space<vmem>>, vector<32x32xf32>
    tpu.vector_store %arg5[%c0_83, %c0_84], %68 {strides = array<i32>} : memref<32x32xf32, #tpu.memory_space<vmem>>, vector<32x32xf32>,
    %c0_85 = arith.constant 0 : index
    %c0_86 = arith.constant 0 : index
    %70 = vector.load %arg7[%c0_85, %c0_86] : memref<128x128xf32, #tpu.memory_space<vmem>>, vector<32x32xf32>
    %c0_87 = arith.constant 0 : index
    %c0_88 = arith.constant 0 : index
    %71 = vector.load %arg4[%c0_87, %c0_88] : memref<32x32xf32, #tpu.memory_space<vmem>>, vector<32x32xf32>
    tpu.vector_store %arg4[%c0_87, %c0_88], %70 {strides = array<i32>} : memref<32x32xf32, #tpu.memory_space<vmem>>, vector<32x32xf32>,
    %c0_89 = arith.constant 0 : index
    %c0_90 = arith.constant 0 : index
    %72 = vector.load %arg7[%c0_89, %c0_90] : memref<128x128xf32, #tpu.memory_space<vmem>>, vector<128x128xf32>
    %73 = arith.truncf %72 : vector<128x128xf32> to vector<128x128xbf16>
    %74 = arith.truncf %67 : vector<128x128xf32> to vector<128x128xbf16>
    %cst_91 = arith.constant dense<0.000000e+00> : vector<128x128xf32>
    %75 = tpu.matmul %73, %74, %cst_91 {dimension_numbers = #tpu.dot_dimension_numbers<[0], [0], [1], [1], [0, 1, 1, 1], [], []>} : vector<128x128xbf16>, vector<128x128xbf16>, vector<128x128xf32> -> vector<128x128xf32>
    %76 = arith.truncf %75 : vector<128x128xf32> to vector<128x128xbf16>
    %cst_92 = arith.constant dense<0.000000e+00> : vector<128x128xf32>
    %77 = tpu.matmul %76, %73, %cst_92 {dimension_numbers = #tpu.dot_dimension_numbers<[1], [0], [0], [1], [0, 0, 1, 1], [], []>} : vector<128x128xbf16>, vector<128x128xbf16>, vector<128x128xf32> -> vector<128x128xf32>
    %78 = vector.extract_strided_slice %77 {offsets = [0, 0], sizes = [32, 32], strides = [1, 1]} : vector<128x128xf32> to vector<32x32xf32>
    %c0_93 = arith.constant 0 : index
    %c0_94 = arith.constant 0 : index
    %79 = vector.load %arg3[%c0_93, %c0_94] : memref<32x32xf32, #tpu.memory_space<vmem>>, vector<32x32xf32>
    tpu.vector_store %arg3[%c0_93, %c0_94], %78 {strides = array<i32>} : memref<32x32xf32, #tpu.memory_space<vmem>>, vector<32x32xf32>,
    return
  }
}

</mosaic_0001>

<llo_original>
// kernel: tpu_custom_call.1
$region0: #{tpu_custom_call.1}
  #allocation0 [shape = 'u32[]', space=smem, size = 0x4, offset = 0x4, fixed_abs, tag = 'smem constant byte address 0x4 - core index']
  #allocation1 [shape = 'u32[144,128]{1,0:T(1,128)}', space=vmem, size = 0x12000, scoped, tag = 'internal scratch']
  #allocation2 [shape = 'f32[128,128]{1,0:T(8,128)}', space=vmem, size = 0x10000, scoped, tag = 'scratch operand']
  #allocation3 [shape = 'f32[128,128]{1,0:T(8,128)}', space=vmem, size = 0x10000, scoped, tag = 'scratch operand']
  #allocation4 [shape = 'f32[128,128]{1,0:T(8,128)}', space=vmem, size = 0x10000, scoped, tag = 'scratch operand']
  %s0 = inlined_call_operand.hbm [shape: f32[32,32], index: 0, kind: input, shape index: {}]
  %s1 = inlined_call_operand.hbm [shape: f32[4,32,32], index: 1, kind: input, shape index: {}]
  %s2 = inlined_call_operand.hbm [shape: f32[32,32], index: 2, kind: input, shape index: {}]
  %s3 = inlined_call_operand.hbm [shape: f32[32,32], index: 3, kind: output, shape index: {0}]
  %s4 = inlined_call_operand.hbm [shape: f32[32,32], index: 4, kind: output, shape index: {1}]
  %s5 = inlined_call_operand.hbm [shape: f32[32,32], index: 5, kind: output, shape index: {2}]
  %6 = xla_tuple %s3, %s4, %s5
  %s7 = sld [smem:[#allocation0]]
  $region50: #{tpu_custom_call.1} parent=0
    _
  %s9 = ssub.s32 1, %s7
  %s10 = scalar_select 0, %s9, %s7
  $region1: #{tpu_custom_call.1} parent=0
    #allocation5 [shape = 'u8[16384]{0}', space=vmem, size = 0x4000, scoped, tag = 'input window, operand 0, single buffered']
    #allocation6 [shape = 's32[1]{0}', space=sflag, size = 0x4, scoped, tag = 'scoped memory for tpu_custom_call.1']
    #allocation7 [shape = 's32[1]{0}', space=sflag, size = 0x4, scoped, tag = 'scoped memory for tpu_custom_call.1']
    #allocation8 [shape = 'u8[65536]{0}', space=vmem, size = 0x10000, scoped, tag = 'input window, operand 1, single buffered']
    #allocation9 [shape = 's32[1]{0}', space=sflag, size = 0x4, scoped, tag = 'scoped memory for tpu_custom_call.1']
    #allocation10 [shape = 'u8[16384]{0}', space=vmem, size = 0x4000, scoped, tag = 'input window, operand 2, single buffered']
    #allocation11 [shape = 'u8[16384]{0}', space=vmem, size = 0x4000, scoped, tag = 'output window, operand 0, single buffered']
    #allocation12 [shape = 'u8[16384]{0}', space=vmem, size = 0x4000, scoped, tag = 'output window, operand 1, single buffered']
    #allocation13 [shape = 's32[1]{0}', space=sflag, size = 0x4, scoped, tag = 'scoped memory for tpu_custom_call.1']
    #allocation14 [shape = 'u8[16384]{0}', space=vmem, size = 0x4000, scoped, tag = 'output window, operand 2, single buffered']
    %11 = vsyncpa [#allocation6], 0
    %12 = vsyncpa [#allocation9], 0
    %13 = vsyncpa [#allocation7], 0
    %14 = vsyncpa [#allocation13], 0
    // Predicated region
    $region2: #{tpu_custom_call.1} parent=1 // pred_check
      _
    $region3: #{tpu_custom_call.1} parent=1 // pred_check_branch
      %16 = sbr.rel (0) target = $region5
    $region4: #{tpu_custom_call.1} parent=1 // pred_region
      %s18 = ssub.s32 512, 512
      %19 = vsyncadd [#allocation6], %s18
      %s20 = sshll.u32 [#allocation5], 4
      %s21 = int_to_ptr.vmem [resolvable:$true] %s20
      %26 = dma.hbm_to_vmem [thread:$0]  %s0, 512, %s21, [#allocation6], 128, 128, 8
    $region5: #{tpu_custom_call.1} parent=1 // pred_fallthru
      _
    // Predicated region
    $region6: #{tpu_custom_call.1} parent=1 // pred_check
      _
    $region7: #{tpu_custom_call.1} parent=1 // pred_check_branch
      %28 = sbr.rel (0) target = $region9
    $region8: #{tpu_custom_call.1} parent=1 // pred_region
      %s30 = ssub.s32 2048, 2048
      %31 = vsyncadd [#allocation9], %s30
      %s32 = sshll.u32 [#allocation8], 4
      %s33 = int_to_ptr.vmem [resolvable:$true] %s32
      %38 = dma.hbm_to_vmem [thread:$0]  %s1, 2048, %s33, [#allocation9], 128, 128, 8
    $region9: #{tpu_custom_call.1} parent=1 // pred_fallthru
      _
    // Predicated region
    $region10: #{tpu_custom_call.1} parent=1 // pred_check
      _
    $region11: #{tpu_custom_call.1} parent=1 // pred_check_branch
      %40 = sbr.rel (0) target = $region13
    $region12: #{tpu_custom_call.1} parent=1 // pred_region
      %s42 = ssub.s32 512, 512
      %43 = vsyncadd [#allocation9], %s42
      %s44 = sshll.u32 [#allocation10], 4
      %s45 = int_to_ptr.vmem [resolvable:$true] %s44
      %50 = dma.hbm_to_vmem [thread:$0]  %s2, 512, %s45, [#allocation9], 128, 128, 8
    $region13: #{tpu_custom_call.1} parent=1 // pred_fallthru
      _
    // Predicated region
    $region14: #{tpu_custom_call.1} parent=1 // pred_check
      _
    $region15: #{tpu_custom_call.1} parent=1 // pred_check_branch
      %52 = sbr.rel (0) target = $region17
    $region16: #{tpu_custom_call.1} parent=1 // pred_region
      %53 = dma.done [#allocation6], 512
    $region17: #{tpu_custom_call.1} parent=1 // pred_fallthru
      _
    // Predicated region
    $region18: #{tpu_custom_call.1} parent=1 // pred_check
      _
    $region19: #{tpu_custom_call.1} parent=1 // pred_check_branch
      %55 = sbr.rel (0) target = $region21
    $region20: #{tpu_custom_call.1} parent=1 // pred_region
      %56 = dma.done [#allocation9], 2048
    $region21: #{tpu_custom_call.1} parent=1 // pred_fallthru
      _
    // Predicated region
    $region22: #{tpu_custom_call.1} parent=1 // pred_check
      _
    $region23: #{tpu_custom_call.1} parent=1 // pred_check_branch
      %58 = sbr.rel (0) target = $region25
    $region24: #{tpu_custom_call.1} parent=1 // pred_region
      %59 = dma.done [#allocation9], 512
    $region25: #{tpu_custom_call.1} parent=1 // pred_fallthru
      _
    %61 = vst [vmem:[#allocation2] sm:$0xff] 0.0
    %62 = vst [vmem:[#allocation2 + $0x8] sm:$0xff] 0.0
    %63 = vst [vmem:[#allocation2 + $0x10] sm:$0xff] 0.0
    %64 = vst [vmem:[#allocation2 + $0x18] sm:$0xff] 0.0
    %65 = vst [vmem:[#allocation2 + $0x20] sm:$0xff] 0.0
    %66 = vst [vmem:[#allocation2 + $0x28] sm:$0xff] 0.0
    %67 = vst [vmem:[#allocation2 + $0x30] sm:$0xff] 0.0
    %68 = vst [vmem:[#allocation2 + $0x38] sm:$0xff] 0.0
    %69 = vst [vmem:[#allocation2 + $0x40] sm:$0xff] 0.0
    %70 = vst [vmem:[#allocation2 + $0x48] sm:$0xff] 0.0
    %71 = vst [vmem:[#allocation2 + $0x50] sm:$0xff] 0.0
    %72 = vst [vmem:[#allocation2 + $0x58] sm:$0xff] 0.0
    %73 = vst [vmem:[#allocation2 + $0x60] sm:$0xff] 0.0
    %74 = vst [vmem:[#allocation2 + $0x68] sm:$0xff] 0.0
    %75 = vst [vmem:[#allocation2 + $0x70] sm:$0xff] 0.0
    %76 = vst [vmem:[#allocation2 + $0x78] sm:$0xff] 0.0
    %77 = vst [vmem:[#allocation4] sm:$0xff] 0.0
    %78 = vst [vmem:[#allocation4 + $0x8] sm:$0xff] 0.0
    %79 = vst [vmem:[#allocation4 + $0x10] sm:$0xff] 0.0
    %80 = vst [vmem:[#allocation4 + $0x18] sm:$0xff] 0.0
    %81 = vst [vmem:[#allocation4 + $0x20] sm:$0xff] 0.0
    %82 = vst [vmem:[#allocation4 + $0x28] sm:$0xff] 0.0
    %83 = vst [vmem:[#allocation4 + $0x30] sm:$0xff] 0.0
    %84 = vst [vmem:[#allocation4 + $0x38] sm:$0xff] 0.0
    %85 = vst [vmem:[#allocation4 + $0x40] sm:$0xff] 0.0
    %86 = vst [vmem:[#allocation4 + $0x48] sm:$0xff] 0.0
    %87 = vst [vmem:[#allocation4 + $0x50] sm:$0xff] 0.0
    %88 = vst [vmem:[#allocation4 + $0x58] sm:$0xff] 0.0
    %89 = vst [vmem:[#allocation4 + $0x60] sm:$0xff] 0.0
    %90 = vst [vmem:[#allocation4 + $0x68] sm:$0xff] 0.0
    %91 = vst [vmem:[#allocation4 + $0x70] sm:$0xff] 0.0
    %92 = vst [vmem:[#allocation4 + $0x78] sm:$0xff] 0.0
    %v93 = vld [vmem:[#allocation5] sm:$0xff]
    %v94 = vld [vmem:[#allocation5 + $0x8] sm:$0xff]
    %v95 = vld [vmem:[#allocation5 + $0x10] sm:$0xff]
    %v96 = vld [vmem:[#allocation5 + $0x18] sm:$0xff]
    %vm97 = vcmask 261120
    %98 = vst.msk [vmem:[#allocation2] sm:$0xff] %vm97, %v93
    %99 = vst.msk [vmem:[#allocation2 + $0x8] sm:$0xff] %vm97, %v94
    %100 = vst.msk [vmem:[#allocation2 + $0x10] sm:$0xff] %vm97, %v95
    %101 = vst.msk [vmem:[#allocation2 + $0x18] sm:$0xff] %vm97, %v96
    %v102 = vld [vmem:[#allocation8] sm:$0xff]
    %v103 = vld [vmem:[#allocation8 + $0x8] sm:$0xff]
    %v104 = vld [vmem:[#allocation8 + $0x10] sm:$0xff]
    %v105 = vld [vmem:[#allocation8 + $0x18] sm:$0xff]
    %106 = vst.msk [vmem:[#allocation4] sm:$0xff] %vm97, %v102
    %107 = vst.msk [vmem:[#allocation4 + $0x8] sm:$0xff] %vm97, %v103
    %108 = vst.msk [vmem:[#allocation4 + $0x10] sm:$0xff] %vm97, %v104
    %109 = vst.msk [vmem:[#allocation4 + $0x18] sm:$0xff] %vm97, %v105
    %v110 = vld [vmem:[#allocation4] sm:$0xff]
    %v111 = vld [vmem:[#allocation4 + $0x8] sm:$0xff]
    %v112 = vld [vmem:[#allocation4 + $0x10] sm:$0xff]
    %v113 = vld [vmem:[#allocation4 + $0x18] sm:$0xff]
    %v114 = vld [vmem:[#allocation4 + $0x20] sm:$0xff]
    %v115 = vld [vmem:[#allocation4 + $0x28] sm:$0xff]
    %v116 = vld [vmem:[#allocation4 + $0x30] sm:$0xff]
    %v117 = vld [vmem:[#allocation4 + $0x38] sm:$0xff]
    %v118 = vld [vmem:[#allocation4 + $0x40] sm:$0xff]
    %v119 = vld [vmem:[#allocation4 + $0x48] sm:$0xff]
    %v120 = vld [vmem:[#allocation4 + $0x50] sm:$0xff]
    %v121 = vld [vmem:[#allocation4 + $0x58] sm:$0xff]
    %v122 = vld [vmem:[#allocation4 + $0x60] sm:$0xff]
    %v123 = vld [vmem:[#allocation4 + $0x68] sm:$0xff]
    %v124 = vld [vmem:[#allocation4 + $0x70] sm:$0xff]
    %v125 = vld [vmem:[#allocation4 + $0x78] sm:$0xff]
    %v126 = vpack.c.bf16 %v111, %v110
    %v127 = vpack.c.bf16 %v113, %v112
    %v128 = vpack.c.bf16 %v115, %v114
    %v129 = vpack.c.bf16 %v117, %v116
    %v130 = vpack.c.bf16 %v119, %v118
    %v131 = vpack.c.bf16 %v121, %v120
    %v132 = vpack.c.bf16 %v123, %v122
    %v133 = vpack.c.bf16 %v125, %v124
    %v134 = vld [vmem:[#allocation2] sm:$0xff]
    %v135 = vld [vmem:[#allocation2 + $0x8] sm:$0xff]
    %v136 = vld [vmem:[#allocation2 + $0x10] sm:$0xff]
    %v137 = vld [vmem:[#allocation2 + $0x18] sm:$0xff]
    %v138 = vld [vmem:[#allocation2 + $0x20] sm:$0xff]
    %v139 = vld [vmem:[#allocation2 + $0x28] sm:$0xff]
    %v140 = vld [vmem:[#allocation2 + $0x30] sm:$0xff]
    %v141 = vld [vmem:[#allocation2 + $0x38] sm:$0xff]
    %v142 = vld [vmem:[#allocation2 + $0x40] sm:$0xff]
    %v143 = vld [vmem:[#allocation2 + $0x48] sm:$0xff]
    %v144 = vld [vmem:[#allocation2 + $0x50] sm:$0xff]
    %v145 = vld [vmem:[#allocation2 + $0x58] sm:$0xff]
    %v146 = vld [vmem:[#allocation2 + $0x60] sm:$0xff]
    %v147 = vld [vmem:[#allocation2 + $0x68] sm:$0xff]
    %v148 = vld [vmem:[#allocation2 + $0x70] sm:$0xff]
    %v149 = vld [vmem:[#allocation2 + $0x78] sm:$0xff]
    %v150 = vpack.c.bf16 %v135, %v134
    %v151 = vpack.c.bf16 %v137, %v136
    %v152 = vpack.c.bf16 %v139, %v138
    %v153 = vpack.c.bf16 %v141, %v140
    %v154 = vpack.c.bf16 %v143, %v142
    %v155 = vpack.c.bf16 %v145, %v144
    %v156 = vpack.c.bf16 %v147, %v146
    %v157 = vpack.c.bf16 %v149, %v148
    %158 = vmatprep.subr.bf16.mxu0 0
    %159 = vmatpush1.bf16.msra.mxu0 %v150
    %160 = vmatprep.subr.bf16.mxu0 0
    %161 = vmatpush1.bf16.msra.mxu0 %v151
    %162 = vmatprep.subr.bf16.mxu0 0
    %163 = vmatpush1.bf16.msra.mxu0 %v152
    %164 = vmatprep.subr.bf16.mxu0 0
    %165 = vmatpush1.bf16.msra.mxu0 %v153
    %166 = vmatprep.subr.bf16.mxu0 0
    %167 = vmatpush1.bf16.msra.mxu0 %v154
    %168 = vmatprep.subr.bf16.mxu0 0
    %169 = vmatpush1.bf16.msra.mxu0 %v155
    %170 = vmatprep.subr.bf16.mxu0 0
    %171 = vmatpush1.bf16.msra.mxu0 %v156
    %172 = vmatprep.subr.bf16.mxu0 0
    %173 = vmatpush1.bf16.msra.mxu0 %v157
    %174 = vmatprep.subr.bf16.mxu0 0
    %175 = vmatpush1.bf16.msra.mxu0 0
    %176 = vmatprep.subr.bf16.mxu0 0
    %177 = vmatpush1.bf16.msra.mxu0 0
    %178 = vmatprep.subr.bf16.mxu0 0
    %179 = vmatpush1.bf16.msra.mxu0 0
    %180 = vmatprep.subr.bf16.mxu0 0
    %181 = vmatpush1.bf16.msra.mxu0 0
    %182 = vmatprep.subr.bf16.mxu0 0
    %183 = vmatpush1.bf16.msra.mxu0 0
    %184 = vmatprep.subr.bf16.mxu0 0
    %185 = vmatpush1.bf16.msra.mxu0 0
    %186 = vmatprep.subr.bf16.mxu0 0
    %187 = vmatpush1.bf16.msra.mxu0 0
    %188 = vmatprep.subr.bf16.mxu0 0
    %189 = vmatpush1.bf16.msra.mxu0 0
    %190 = vmatprep.mubr.bf16.mxu0 0
    %191 = vmatmul.mubr.bf16.gmra.mrb[0].mxu0 %v126
    %v192 = vpop.f32.mrb[0].mxu0
    %v193 = vadd.f32 0.0, %v192
    %v194 = vpop.f32.mrb[0].mxu0
    %v195 = vpop.f32.mrb[0].mxu0
    %v196 = vadd.f32 0.0, %v195
    %v197 = vpop.f32.mrb[0].mxu0
    %198 = vmatprep.mubr.bf16.mxu0 0
    %199 = vmatmul.mubr.bf16.gmra.mrb[0].mxu0 %v127
    %v200 = vpop.f32.mrb[0].mxu0
    %v201 = vadd.f32 0.0, %v200
    %v202 = vpop.f32.mrb[0].mxu0
    %v203 = vpop.f32.mrb[0].mxu0
    %v204 = vadd.f32 0.0, %v203
    %v205 = vpop.f32.mrb[0].mxu0
    %206 = vmatprep.mubr.bf16.mxu0 0
    %207 = vmatmul.mubr.bf16.gmra.mrb[0].mxu0 %v128
    %v208 = vpop.f32.mrb[0].mxu0
    %v209 = vadd.f32 0.0, %v208
    %v210 = vpop.f32.mrb[0].mxu0
    %v211 = vpop.f32.mrb[0].mxu0
    %v212 = vadd.f32 0.0, %v211
    %v213 = vpop.f32.mrb[0].mxu0
    %214 = vmatprep.mubr.bf16.mxu0 0
    %215 = vmatmul.mubr.bf16.gmra.mrb[0].mxu0 %v129
    %v216 = vpop.f32.mrb[0].mxu0
    %v217 = vadd.f32 0.0, %v216
    %v218 = vpop.f32.mrb[0].mxu0
    %v219 = vpop.f32.mrb[0].mxu0
    %v220 = vadd.f32 0.0, %v219
    %v221 = vpop.f32.mrb[0].mxu0
    %222 = vmatprep.mubr.bf16.mxu0 0
    %223 = vmatmul.mubr.bf16.gmra.mrb[0].mxu0 %v130
    %v224 = vpop.f32.mrb[0].mxu0
    %v225 = vadd.f32 0.0, %v224
    %v226 = vpop.f32.mrb[0].mxu0
    %v227 = vpop.f32.mrb[0].mxu0
    %v228 = vadd.f32 0.0, %v227
    %v229 = vpop.f32.mrb[0].mxu0
    %230 = vmatprep.mubr.bf16.mxu0 0
    %231 = vmatmul.mubr.bf16.gmra.mrb[0].mxu0 %v131
    %v232 = vpop.f32.mrb[0].mxu0
    %v233 = vadd.f32 0.0, %v232
    %v234 = vpop.f32.mrb[0].mxu0
    %v235 = vpop.f32.mrb[0].mxu0
    %v236 = vadd.f32 0.0, %v235
    %v237 = vpop.f32.mrb[0].mxu0
    %238 = vmatprep.mubr.bf16.mxu0 0
    %239 = vmatmul.mubr.bf16.gmra.mrb[0].mxu0 %v132
    %v240 = vpop.f32.mrb[0].mxu0
    %v241 = vadd.f32 0.0, %v240
    %v242 = vpop.f32.mrb[0].mxu0
    %v243 = vpop.f32.mrb[0].mxu0
    %v244 = vadd.f32 0.0, %v243
    %v245 = vpop.f32.mrb[0].mxu0
    %246 = vmatprep.mubr.bf16.mxu0 0
    %247 = vmatmul.mubr.bf16.gmra.mrb[0].mxu0 %v133
    %v248 = vpop.f32.mrb[0].mxu0
    %v249 = vadd.f32 0.0, %v248
    %v250 = vpop.f32.mrb[0].mxu0
    %v251 = vpop.f32.mrb[0].mxu0
    %v252 = vadd.f32 0.0, %v251
    %v253 = vpop.f32.mrb[0].mxu0
    %254 = vdwg.mxu0
    %255 = vst [vmem:[#allocation3] sm:$0xff] %v110
    %256 = vst [vmem:[#allocation3 + $0x8] sm:$0xff] %v111
    %257 = vst [vmem:[#allocation3 + $0x10] sm:$0xff] %v112
    %258 = vst [vmem:[#allocation3 + $0x18] sm:$0xff] %v113
    %259 = vst [vmem:[#allocation3 + $0x20] sm:$0xff] %v114
    %260 = vst [vmem:[#allocation3 + $0x28] sm:$0xff] %v115
    %261 = vst [vmem:[#allocation3 + $0x30] sm:$0xff] %v116
    %262 = vst [vmem:[#allocation3 + $0x38] sm:$0xff] %v117
    %263 = vst [vmem:[#allocation3 + $0x40] sm:$0xff] %v118
    %264 = vst [vmem:[#allocation3 + $0x48] sm:$0xff] %v119
    %265 = vst [vmem:[#allocation3 + $0x50] sm:$0xff] %v120
    %266 = vst [vmem:[#allocation3 + $0x58] sm:$0xff] %v121
    %267 = vst [vmem:[#allocation3 + $0x60] sm:$0xff] %v122
    %268 = vst [vmem:[#allocation3 + $0x68] sm:$0xff] %v123
    %269 = vst [vmem:[#allocation3 + $0x70] sm:$0xff] %v124
    %270 = vst [vmem:[#allocation3 + $0x78] sm:$0xff] %v125
    %v271 = vpack.c.bf16 %v196, %v193
    %v272 = vpack.c.bf16 %v204, %v201
    %v273 = vpack.c.bf16 %v212, %v209
    %v274 = vpack.c.bf16 %v220, %v217
    %v275 = vpack.c.bf16 %v228, %v225
    %v276 = vpack.c.bf16 %v236, %v233
    %v277 = vpack.c.bf16 %v244, %v241
    %v278 = vpack.c.bf16 %v252, %v249
    %279 = vmatprep.subr.bf16.mxu0 0
    %280 = vmatpush1.bf16.xpose.msra.mxu0 %v126
    %281 = vmatprep.subr.bf16.mxu0 0
    %282 = vmatpush1.bf16.xpose.msra.mxu0 %v127
    %283 = vmatprep.subr.bf16.mxu0 0
    %284 = vmatpush1.bf16.xpose.msra.mxu0 %v128
    %285 = vmatprep.subr.bf16.mxu0 0
    %286 = vmatpush1.bf16.xpose.msra.mxu0 %v129
    %287 = vmatprep.subr.bf16.mxu0 0
    %288 = vmatpush1.bf16.xpose.msra.mxu0 %v130
    %289 = vmatprep.subr.bf16.mxu0 0
    %290 = vmatpush1.bf16.xpose.msra.mxu0 %v131
    %291 = vmatprep.subr.bf16.mxu0 0
    %292 = vmatpush1.bf16.xpose.msra.mxu0 %v132
    %293 = vmatprep.subr.bf16.mxu0 0
    %294 = vmatpush1.bf16.xpose.msra.mxu0 %v133
    %295 = vmatprep.subr.bf16.mxu0 0
    %296 = vmatpush1.bf16.xpose.msra.mxu0 0
    %297 = vmatprep.subr.bf16.mxu0 0
    %298 = vmatpush1.bf16.xpose.msra.mxu0 0
    %299 = vmatprep.subr.bf16.mxu0 0
    %300 = vmatpush1.bf16.xpose.msra.mxu0 0
    %301 = vmatprep.subr.bf16.mxu0 0
    %302 = vmatpush1.bf16.xpose.msra.mxu0 0
    %303 = vmatprep.subr.bf16.mxu0 0
    %304 = vmatpush1.bf16.xpose.msra.mxu0 0
    %305 = vmatprep.subr.bf16.mxu0 0
    %306 = vmatpush1.bf16.xpose.msra.mxu0 0
    %307 = vmatprep.subr.bf16.mxu0 0
    %308 = vmatpush1.bf16.xpose.msra.mxu0 0
    %309 = vmatprep.subr.bf16.mxu0 0
    %310 = vmatpush1.bf16.xpose.msra.mxu0 0
    %311 = vmatprep.mubr.bf16.mxu0 0
    %312 = vmatmul.mubr.bf16.gmra.mrb[0].mxu0 %v271
    %v313 = vpop.f32.mrb[0].mxu0
    %v314 = vadd.f32 0.0, %v313
    %v315 = vpop.f32.mrb[0].mxu0
    %v316 = vpop.f32.mrb[0].mxu0
    %v317 = vadd.f32 0.0, %v316
    %v318 = vpop.f32.mrb[0].mxu0
    %319 = vmatprep.mubr.bf16.mxu0 0
    %320 = vmatmul.mubr.bf16.gmra.mrb[0].mxu0 %v272
    %v321 = vpop.f32.mrb[0].mxu0
    %v322 = vadd.f32 0.0, %v321
    %v323 = vpop.f32.mrb[0].mxu0
    %v324 = vpop.f32.mrb[0].mxu0
    %v325 = vadd.f32 0.0, %v324
    %v326 = vpop.f32.mrb[0].mxu0
    %327 = vmatprep.mubr.bf16.mxu0 0
    %328 = vmatmul.mubr.bf16.gmra.mrb[0].mxu0 %v273
    %v329 = vpop.f32.mrb[0].mxu0
    %v330 = vadd.f32 0.0, %v329
    %v331 = vpop.f32.mrb[0].mxu0
    %v332 = vpop.f32.mrb[0].mxu0
    %v333 = vadd.f32 0.0, %v332
    %v334 = vpop.f32.mrb[0].mxu0
    %335 = vmatprep.mubr.bf16.mxu0 0
    %336 = vmatmul.mubr.bf16.gmra.mrb[0].mxu0 %v274
    %v337 = vpop.f32.mrb[0].mxu0
    %v338 = vadd.f32 0.0, %v337
    %v339 = vpop.f32.mrb[0].mxu0
    %v340 = vpop.f32.mrb[0].mxu0
    %v341 = vadd.f32 0.0, %v340
    %v342 = vpop.f32.mrb[0].mxu0
    %343 = vmatprep.mubr.bf16.mxu0 0
    %344 = vmatmul.mubr.bf16.gmra.mrb[0].mxu0 %v275
    %v345 = vpop.f32.mrb[0].mxu0
    %v346 = vadd.f32 0.0, %v345
    %v347 = vpop.f32.mrb[0].mxu0
    %v348 = vpop.f32.mrb[0].mxu0
    %v349 = vadd.f32 0.0, %v348
    %v350 = vpop.f32.mrb[0].mxu0
    %351 = vmatprep.mubr.bf16.mxu0 0
    %352 = vmatmul.mubr.bf16.gmra.mrb[0].mxu0 %v276
    %v353 = vpop.f32.mrb[0].mxu0
    %v354 = vadd.f32 0.0, %v353
    %v355 = vpop.f32.mrb[0].mxu0
    %v356 = vpop.f32.mrb[0].mxu0
    %v357 = vadd.f32 0.0, %v356
    %v358 = vpop.f32.mrb[0].mxu0
    %359 = vmatprep.mubr.bf16.mxu0 0
    %360 = vmatmul.mubr.bf16.gmra.mrb[0].mxu0 %v277
    %v361 = vpop.f32.mrb[0].mxu0
    %v362 = vadd.f32 0.0, %v361
    %v363 = vpop.f32.mrb[0].mxu0
    %v364 = vpop.f32.mrb[0].mxu0
    %v365 = vadd.f32 0.0, %v364
    %v366 = vpop.f32.mrb[0].mxu0
    %367 = vmatprep.mubr.bf16.mxu0 0
    %368 = vmatmul.mubr.bf16.gmra.mrb[0].mxu0 %v278
    %v369 = vpop.f32.mrb[0].mxu0
    %v370 = vadd.f32 0.0, %v369
    %v371 = vpop.f32.mrb[0].mxu0
    %v372 = vpop.f32.mrb[0].mxu0
    %v373 = vadd.f32 0.0, %v372
    %v374 = vpop.f32.mrb[0].mxu0
    %375 = vdwg.mxu0
    %376 = vst [vmem:[#allocation2] sm:$0xff] %v314
    %377 = vst [vmem:[#allocation2 + $0x8] sm:$0xff] %v317
    %378 = vst [vmem:[#allocation2 + $0x10] sm:$0xff] %v322
    %379 = vst [vmem:[#allocation2 + $0x18] sm:$0xff] %v325
    %380 = vst [vmem:[#allocation2 + $0x20] sm:$0xff] %v330
    %381 = vst [vmem:[#allocation2 + $0x28] sm:$0xff] %v333
    %382 = vst [vmem:[#allocation2 + $0x30] sm:$0xff] %v338
    %383 = vst [vmem:[#allocation2 + $0x38] sm:$0xff] %v341
    %384 = vst [vmem:[#allocation2 + $0x40] sm:$0xff] %v346
    %385 = vst [vmem:[#allocation2 + $0x48] sm:$0xff] %v349
    %386 = vst [vmem:[#allocation2 + $0x50] sm:$0xff] %v354
    %387 = vst [vmem:[#allocation2 + $0x58] sm:$0xff] %v357
    %388 = vst [vmem:[#allocation2 + $0x60] sm:$0xff] %v362
    %389 = vst [vmem:[#allocation2 + $0x68] sm:$0xff] %v365
    %390 = vst [vmem:[#allocation2 + $0x70] sm:$0xff] %v370
    %391 = vst [vmem:[#allocation2 + $0x78] sm:$0xff] %v373
    %s392 = scalar_lea.vmem [#allocation8], 32
    %v393 = vld [vmem:[%s392] sm:$0xff]
    %v394 = vld [vmem:[%s392 + $0x8] sm:$0xff]
    %v395 = vld [vmem:[%s392 + $0x10] sm:$0xff]
    %v396 = vld [vmem:[%s392 + $0x18] sm:$0xff]
    %397 = vst.msk [vmem:[#allocation4] sm:$0xff] %vm97, %v393
    %398 = vst.msk [vmem:[#allocation4 + $0x8] sm:$0xff] %vm97, %v394
    %399 = vst.msk [vmem:[#allocation4 + $0x10] sm:$0xff] %vm97, %v395
    %400 = vst.msk [vmem:[#allocation4 + $0x18] sm:$0xff] %vm97, %v396
    %v401 = vld [vmem:[#allocation4] sm:$0xff]
    %v402 = vld [vmem:[#allocation4 + $0x8] sm:$0xff]
    %v403 = vld [vmem:[#allocation4 + $0x10] sm:$0xff]
    %v404 = vld [vmem:[#allocation4 + $0x18] sm:$0xff]
    %v405 = vld [vmem:[#allocation4 + $0x20] sm:$0xff]
    %v406 = vld [vmem:[#allocation4 + $0x28] sm:$0xff]
    %v407 = vld [vmem:[#allocation4 + $0x30] sm:$0xff]
    %v408 = vld [vmem:[#allocation4 + $0x38] sm:$0xff]
    %v409 = vld [vmem:[#allocation4 + $0x40] sm:$0xff]
    %v410 = vld [vmem:[#allocation4 + $0x48] sm:$0xff]
    %v411 = vld [vmem:[#allocation4 + $0x50] sm:$0xff]
    %v412 = vld [vmem:[#allocation4 + $0x58] sm:$0xff]
    %v413 = vld [vmem:[#allocation4 + $0x60] sm:$0xff]
    %v414 = vld [vmem:[#allocation4 + $0x68] sm:$0xff]
    %v415 = vld [vmem:[#allocation4 + $0x70] sm:$0xff]
    %v416 = vld [vmem:[#allocation4 + $0x78] sm:$0xff]
    %v417 = vpack.c.bf16 %v402, %v401
    %v418 = vpack.c.bf16 %v404, %v403
    %v419 = vpack.c.bf16 %v406, %v405
    %v420 = vpack.c.bf16 %v408, %v407
    %v421 = vpack.c.bf16 %v410, %v409
    %v422 = vpack.c.bf16 %v412, %v411
    %v423 = vpack.c.bf16 %v414, %v413
    %v424 = vpack.c.bf16 %v416, %v415
    %v425 = vld [vmem:[#allocation2] sm:$0xff]
    %v426 = vld [vmem:[#allocation2 + $0x8] sm:$0xff]
    %v427 = vld [vmem:[#allocation2 + $0x10] sm:$0xff]
    %v428 = vld [vmem:[#allocation2 + $0x18] sm:$0xff]
    %v429 = vld [vmem:[#allocation2 + $0x20] sm:$0xff]
    %v430 = vld [vmem:[#allocation2 + $0x28] sm:$0xff]
    %v431 = vld [vmem:[#allocation2 + $0x30] sm:$0xff]
    %v432 = vld [vmem:[#allocation2 + $0x38] sm:$0xff]
    %v433 = vld [vmem:[#allocation2 + $0x40] sm:$0xff]
    %v434 = vld [vmem:[#allocation2 + $0x48] sm:$0xff]
    %v435 = vld [vmem:[#allocation2 + $0x50] sm:$0xff]
    %v436 = vld [vmem:[#allocation2 + $0x58] sm:$0xff]
    %v437 = vld [vmem:[#allocation2 + $0x60] sm:$0xff]
    %v438 = vld [vmem:[#allocation2 + $0x68] sm:$0xff]
    %v439 = vld [vmem:[#allocation2 + $0x70] sm:$0xff]
    %v440 = vld [vmem:[#allocation2 + $0x78] sm:$0xff]
    %v441 = vpack.c.bf16 %v426, %v425
    %v442 = vpack.c.bf16 %v428, %v427
    %v443 = vpack.c.bf16 %v430, %v429
    %v444 = vpack.c.bf16 %v432, %v431
    %v445 = vpack.c.bf16 %v434, %v433
    %v446 = vpack.c.bf16 %v436, %v435
    %v447 = vpack.c.bf16 %v438, %v437
    %v448 = vpack.c.bf16 %v440, %v439
    %449 = vmatprep.subr.bf16.mxu0 0
    %450 = vmatpush1.bf16.msra.mxu0 %v441
    %451 = vmatprep.subr.bf16.mxu0 0
    %452 = vmatpush1.bf16.msra.mxu0 %v442
    %453 = vmatprep.subr.bf16.mxu0 0
    %454 = vmatpush1.bf16.msra.mxu0 %v443
    %455 = vmatprep.subr.bf16.mxu0 0
    %456 = vmatpush1.bf16.msra.mxu0 %v444
    %457 = vmatprep.subr.bf16.mxu0 0
    %458 = vmatpush1.bf16.msra.mxu0 %v445
    %459 = vmatprep.subr.bf16.mxu0 0
    %460 = vmatpush1.bf16.msra.mxu0 %v446
    %461 = vmatprep.subr.bf16.mxu0 0
    %462 = vmatpush1.bf16.msra.mxu0 %v447
    %463 = vmatprep.subr.bf16.mxu0 0
    %464 = vmatpush1.bf16.msra.mxu0 %v448
    %465 = vmatprep.subr.bf16.mxu0 0
    %466 = vmatpush1.bf16.msra.mxu0 0
    %467 = vmatprep.subr.bf16.mxu0 0
    %468 = vmatpush1.bf16.msra.mxu0 0
    %469 = vmatprep.subr.bf16.mxu0 0
    %470 = vmatpush1.bf16.msra.mxu0 0
    %471 = vmatprep.subr.bf16.mxu0 0
    %472 = vmatpush1.bf16.msra.mxu0 0
    %473 = vmatprep.subr.bf16.mxu0 0
    %474 = vmatpush1.bf16.msra.mxu0 0
    %475 = vmatprep.subr.bf16.mxu0 0
    %476 = vmatpush1.bf16.msra.mxu0 0
    %477 = vmatprep.subr.bf16.mxu0 0
    %478 = vmatpush1.bf16.msra.mxu0 0
    %479 = vmatprep.subr.bf16.mxu0 0
    %480 = vmatpush1.bf16.msra.mxu0 0
    %481 = vmatprep.mubr.bf16.mxu0 0
    %482 = vmatmul.mubr.bf16.gmra.mrb[0].mxu0 %v417
    %v483 = vpop.f32.mrb[0].mxu0
    %v484 = vadd.f32 0.0, %v483
    %v485 = vpop.f32.mrb[0].mxu0
    %v486 = vpop.f32.mrb[0].mxu0
    %v487 = vadd.f32 0.0, %v486
    %v488 = vpop.f32.mrb[0].mxu0
    %489 = vmatprep.mubr.bf16.mxu0 0
    %490 = vmatmul.mubr.bf16.gmra.mrb[0].mxu0 %v418
    %v491 = vpop.f32.mrb[0].mxu0
    %v492 = vadd.f32 0.0, %v491
    %v493 = vpop.f32.mrb[0].mxu0
    %v494 = vpop.f32.mrb[0].mxu0
    %v495 = vadd.f32 0.0, %v494
    %v496 = vpop.f32.mrb[0].mxu0
    %497 = vmatprep.mubr.bf16.mxu0 0
    %498 = vmatmul.mubr.bf16.gmra.mrb[0].mxu0 %v419
    %v499 = vpop.f32.mrb[0].mxu0
    %v500 = vadd.f32 0.0, %v499
    %v501 = vpop.f32.mrb[0].mxu0
    %v502 = vpop.f32.mrb[0].mxu0
    %v503 = vadd.f32 0.0, %v502
    %v504 = vpop.f32.mrb[0].mxu0
    %505 = vmatprep.mubr.bf16.mxu0 0
    %506 = vmatmul.mubr.bf16.gmra.mrb[0].mxu0 %v420
    %v507 = vpop.f32.mrb[0].mxu0
    %v508 = vadd.f32 0.0, %v507
    %v509 = vpop.f32.mrb[0].mxu0
    %v510 = vpop.f32.mrb[0].mxu0
    %v511 = vadd.f32 0.0, %v510
    %v512 = vpop.f32.mrb[0].mxu0
    %513 = vmatprep.mubr.bf16.mxu0 0
    %514 = vmatmul.mubr.bf16.gmra.mrb[0].mxu0 %v421
    %v515 = vpop.f32.mrb[0].mxu0
    %v516 = vadd.f32 0.0, %v515
    %v517 = vpop.f32.mrb[0].mxu0
    %v518 = vpop.f32.mrb[0].mxu0
    %v519 = vadd.f32 0.0, %v518
    %v520 = vpop.f32.mrb[0].mxu0
    %521 = vmatprep.mubr.bf16.mxu0 0
    %522 = vmatmul.mubr.bf16.gmra.mrb[0].mxu0 %v422
    %v523 = vpop.f32.mrb[0].mxu0
    %v524 = vadd.f32 0.0, %v523
    %v525 = vpop.f32.mrb[0].mxu0
    %v526 = vpop.f32.mrb[0].mxu0
    %v527 = vadd.f32 0.0, %v526
    %v528 = vpop.f32.mrb[0].mxu0
    %529 = vmatprep.mubr.bf16.mxu0 0
    %530 = vmatmul.mubr.bf16.gmra.mrb[0].mxu0 %v423
    %v531 = vpop.f32.mrb[0].mxu0
    %v532 = vadd.f32 0.0, %v531
    %v533 = vpop.f32.mrb[0].mxu0
    %v534 = vpop.f32.mrb[0].mxu0
    %v535 = vadd.f32 0.0, %v534
    %v536 = vpop.f32.mrb[0].mxu0
    %537 = vmatprep.mubr.bf16.mxu0 0
    %538 = vmatmul.mubr.bf16.gmra.mrb[0].mxu0 %v424
    %v539 = vpop.f32.mrb[0].mxu0
    %v540 = vadd.f32 0.0, %v539
    %v541 = vpop.f32.mrb[0].mxu0
    %v542 = vpop.f32.mrb[0].mxu0
    %v543 = vadd.f32 0.0, %v542
    %v544 = vpop.f32.mrb[0].mxu0
    %545 = vdwg.mxu0
    %v546 = vld [vmem:[#allocation3] sm:$0xff]
    %v547 = vld [vmem:[#allocation3 + $0x8] sm:$0xff]
    %v548 = vld [vmem:[#allocation3 + $0x10] sm:$0xff]
    %v549 = vld [vmem:[#allocation3 + $0x18] sm:$0xff]
    %v550 = vld [vmem:[#allocation3 + $0x20] sm:$0xff]
    %v551 = vld [vmem:[#allocation3 + $0x28] sm:$0xff]
    %v552 = vld [vmem:[#allocation3 + $0x30] sm:$0xff]
    %v553 = vld [vmem:[#allocation3 + $0x38] sm:$0xff]
    %v554 = vld [vmem:[#allocation3 + $0x40] sm:$0xff]
    %v555 = vld [vmem:[#allocation3 + $0x48] sm:$0xff]
    %v556 = vld [vmem:[#allocation3 + $0x50] sm:$0xff]
    %v557 = vld [vmem:[#allocation3 + $0x58] sm:$0xff]
    %v558 = vld [vmem:[#allocation3 + $0x60] sm:$0xff]
    %v559 = vld [vmem:[#allocation3 + $0x68] sm:$0xff]
    %v560 = vld [vmem:[#allocation3 + $0x70] sm:$0xff]
    %v561 = vld [vmem:[#allocation3 + $0x78] sm:$0xff]
    %v562 = vpack.c.bf16 %v547, %v546
    %v563 = vpack.c.bf16 %v549, %v548
    %v564 = vpack.c.bf16 %v551, %v550
    %v565 = vpack.c.bf16 %v553, %v552
    %v566 = vpack.c.bf16 %v555, %v554
    %v567 = vpack.c.bf16 %v557, %v556
    %v568 = vpack.c.bf16 %v559, %v558
    %v569 = vpack.c.bf16 %v561, %v560
    %570 = vmatprep.subr.bf16.mxu0 0
    %571 = vmatpush1.bf16.msra.mxu0 %v562
    %572 = vmatprep.subr.bf16.mxu0 0
    %573 = vmatpush1.bf16.msra.mxu0 %v563
    %574 = vmatprep.subr.bf16.mxu0 0
    %575 = vmatpush1.bf16.msra.mxu0 %v564
    %576 = vmatprep.subr.bf16.mxu0 0
    %577 = vmatpush1.bf16.msra.mxu0 %v565
    %578 = vmatprep.subr.bf16.mxu0 0
    %579 = vmatpush1.bf16.msra.mxu0 %v566
    %580 = vmatprep.subr.bf16.mxu0 0
    %581 = vmatpush1.bf16.msra.mxu0 %v567
    %582 = vmatprep.subr.bf16.mxu0 0
    %583 = vmatpush1.bf16.msra.mxu0 %v568
    %584 = vmatprep.subr.bf16.mxu0 0
    %585 = vmatpush1.bf16.msra.mxu0 %v569
    %586 = vmatprep.subr.bf16.mxu0 0
    %587 = vmatpush1.bf16.msra.mxu0 0
    %588 = vmatprep.subr.bf16.mxu0 0
    %589 = vmatpush1.bf16.msra.mxu0 0
    %590 = vmatprep.subr.bf16.mxu0 0
    %591 = vmatpush1.bf16.msra.mxu0 0
    %592 = vmatprep.subr.bf16.mxu0 0
    %593 = vmatpush1.bf16.msra.mxu0 0
    %594 = vmatprep.subr.bf16.mxu0 0
    %595 = vmatpush1.bf16.msra.mxu0 0
    %596 = vmatprep.subr.bf16.mxu0 0
    %597 = vmatpush1.bf16.msra.mxu0 0
    %598 = vmatprep.subr.bf16.mxu0 0
    %599 = vmatpush1.bf16.msra.mxu0 0
    %600 = vmatprep.subr.bf16.mxu0 0
    %601 = vmatpush1.bf16.msra.mxu0 0
    %602 = vmatprep.mubr.bf16.mxu0 0
    %603 = vmatmul.mubr.bf16.gmra.mrb[0].mxu0 %v417
    %v604 = vpop.f32.mrb[0].mxu0
    %v605 = vadd.f32 0.0, %v604
    %v606 = vpop.f32.mrb[0].mxu0
    %v607 = vpop.f32.mrb[0].mxu0
    %v608 = vadd.f32 0.0, %v607
    %v609 = vpop.f32.mrb[0].mxu0
    %610 = vmatprep.mubr.bf16.mxu0 0
    %611 = vmatmul.mubr.bf16.gmra.mrb[0].mxu0 %v418
    %v612 = vpop.f32.mrb[0].mxu0
    %v613 = vadd.f32 0.0, %v612
    %v614 = vpop.f32.mrb[0].mxu0
    %v615 = vpop.f32.mrb[0].mxu0
    %v616 = vadd.f32 0.0, %v615
    %v617 = vpop.f32.mrb[0].mxu0
    %618 = vmatprep.mubr.bf16.mxu0 0
    %619 = vmatmul.mubr.bf16.gmra.mrb[0].mxu0 %v419
    %v620 = vpop.f32.mrb[0].mxu0
    %v621 = vadd.f32 0.0, %v620
    %v622 = vpop.f32.mrb[0].mxu0
    %v623 = vpop.f32.mrb[0].mxu0
    %v624 = vadd.f32 0.0, %v623
    %v625 = vpop.f32.mrb[0].mxu0
    %626 = vmatprep.mubr.bf16.mxu0 0
    %627 = vmatmul.mubr.bf16.gmra.mrb[0].mxu0 %v420
    %v628 = vpop.f32.mrb[0].mxu0
    %v629 = vadd.f32 0.0, %v628
    %v630 = vpop.f32.mrb[0].mxu0
    %v631 = vpop.f32.mrb[0].mxu0
    %v632 = vadd.f32 0.0, %v631
    %v633 = vpop.f32.mrb[0].mxu0
    %634 = vmatprep.mubr.bf16.mxu0 0
    %635 = vmatmul.mubr.bf16.gmra.mrb[0].mxu0 %v421
    %v636 = vpop.f32.mrb[0].mxu0
    %v637 = vadd.f32 0.0, %v636
    %v638 = vpop.f32.mrb[0].mxu0
    %v639 = vpop.f32.mrb[0].mxu0
    %v640 = vadd.f32 0.0, %v639
    %v641 = vpop.f32.mrb[0].mxu0
    %642 = vmatprep.mubr.bf16.mxu0 0
    %643 = vmatmul.mubr.bf16.gmra.mrb[0].mxu0 %v422
    %v644 = vpop.f32.mrb[0].mxu0
    %v645 = vadd.f32 0.0, %v644
    %v646 = vpop.f32.mrb[0].mxu0
    %v647 = vpop.f32.mrb[0].mxu0
    %v648 = vadd.f32 0.0, %v647
    %v649 = vpop.f32.mrb[0].mxu0
    %650 = vmatprep.mubr.bf16.mxu0 0
    %651 = vmatmul.mubr.bf16.gmra.mrb[0].mxu0 %v423
    %v652 = vpop.f32.mrb[0].mxu0
    %v653 = vadd.f32 0.0, %v652
    %v654 = vpop.f32.mrb[0].mxu0
    %v655 = vpop.f32.mrb[0].mxu0
    %v656 = vadd.f32 0.0, %v655
    %v657 = vpop.f32.mrb[0].mxu0
    %658 = vmatprep.mubr.bf16.mxu0 0
    %659 = vmatmul.mubr.bf16.gmra.mrb[0].mxu0 %v424
    %v660 = vpop.f32.mrb[0].mxu0
    %v661 = vadd.f32 0.0, %v660
    %v662 = vpop.f32.mrb[0].mxu0
    %v663 = vpop.f32.mrb[0].mxu0
    %v664 = vadd.f32 0.0, %v663
    %v665 = vpop.f32.mrb[0].mxu0
    %666 = vdwg.mxu0
    %667 = vst [vmem:[#allocation3] sm:$0xff] %v605
    %668 = vst [vmem:[#allocation3 + $0x8] sm:$0xff] %v608
    %669 = vst [vmem:[#allocation3 + $0x10] sm:$0xff] %v613
    %670 = vst [vmem:[#allocation3 + $0x18] sm:$0xff] %v616
    %671 = vst [vmem:[#allocation3 + $0x20] sm:$0xff] %v621
    %672 = vst [vmem:[#allocation3 + $0x28] sm:$0xff] %v624
    %673 = vst [vmem:[#allocation3 + $0x30] sm:$0xff] %v629
    %674 = vst [vmem:[#allocation3 + $0x38] sm:$0xff] %v632
    %675 = vst [vmem:[#allocation3 + $0x40] sm:$0xff] %v637
    %676 = vst [vmem:[#allocation3 + $0x48] sm:$0xff] %v640
    %677 = vst [vmem:[#allocation3 + $0x50] sm:$0xff] %v645
    %678 = vst [vmem:[#allocation3 + $0x58] sm:$0xff] %v648
    %679 = vst [vmem:[#allocation3 + $0x60] sm:$0xff] %v653
    %680 = vst [vmem:[#allocation3 + $0x68] sm:$0xff] %v656
    %681 = vst [vmem:[#allocation3 + $0x70] sm:$0xff] %v661
    %682 = vst [vmem:[#allocation3 + $0x78] sm:$0xff] %v664
    %v683 = vpack.c.bf16 %v487, %v484
    %v684 = vpack.c.bf16 %v495, %v492
    %v685 = vpack.c.bf16 %v503, %v500
    %v686 = vpack.c.bf16 %v511, %v508
    %v687 = vpack.c.bf16 %v519, %v516
    %v688 = vpack.c.bf16 %v527, %v524
    %v689 = vpack.c.bf16 %v535, %v532
    %v690 = vpack.c.bf16 %v543, %v540
    %691 = vmatprep.subr.bf16.mxu0 0
    %692 = vmatpush1.bf16.xpose.msra.mxu0 %v417
    %693 = vmatprep.subr.bf16.mxu0 0
    %694 = vmatpush1.bf16.xpose.msra.mxu0 %v418
    %695 = vmatprep.subr.bf16.mxu0 0
    %696 = vmatpush1.bf16.xpose.msra.mxu0 %v419
    %697 = vmatprep.subr.bf16.mxu0 0
    %698 = vmatpush1.bf16.xpose.msra.mxu0 %v420
    %699 = vmatprep.subr.bf16.mxu0 0
    %700 = vmatpush1.bf16.xpose.msra.mxu0 %v421
    %701 = vmatprep.subr.bf16.mxu0 0
    %702 = vmatpush1.bf16.xpose.msra.mxu0 %v422
    %703 = vmatprep.subr.bf16.mxu0 0
    %704 = vmatpush1.bf16.xpose.msra.mxu0 %v423
    %705 = vmatprep.subr.bf16.mxu0 0
    %706 = vmatpush1.bf16.xpose.msra.mxu0 %v424
    %707 = vmatprep.subr.bf16.mxu0 0
    %708 = vmatpush1.bf16.xpose.msra.mxu0 0
    %709 = vmatprep.subr.bf16.mxu0 0
    %710 = vmatpush1.bf16.xpose.msra.mxu0 0
    %711 = vmatprep.subr.bf16.mxu0 0
    %712 = vmatpush1.bf16.xpose.msra.mxu0 0
    %713 = vmatprep.subr.bf16.mxu0 0
    %714 = vmatpush1.bf16.xpose.msra.mxu0 0
    %715 = vmatprep.subr.bf16.mxu0 0
    %716 = vmatpush1.bf16.xpose.msra.mxu0 0
    %717 = vmatprep.subr.bf16.mxu0 0
    %718 = vmatpush1.bf16.xpose.msra.mxu0 0
    %719 = vmatprep.subr.bf16.mxu0 0
    %720 = vmatpush1.bf16.xpose.msra.mxu0 0
    %721 = vmatprep.subr.bf16.mxu0 0
    %722 = vmatpush1.bf16.xpose.msra.mxu0 0
    %723 = vmatprep.mubr.bf16.mxu0 0
    %724 = vmatmul.mubr.bf16.gmra.mrb[0].mxu0 %v683
    %v725 = vpop.f32.mrb[0].mxu0
    %v726 = vadd.f32 0.0, %v725
    %v727 = vpop.f32.mrb[0].mxu0
    %v728 = vpop.f32.mrb[0].mxu0
    %v729 = vadd.f32 0.0, %v728
    %v730 = vpop.f32.mrb[0].mxu0
    %731 = vmatprep.mubr.bf16.mxu0 0
    %732 = vmatmul.mubr.bf16.gmra.mrb[0].mxu0 %v684
    %v733 = vpop.f32.mrb[0].mxu0
    %v734 = vadd.f32 0.0, %v733
    %v735 = vpop.f32.mrb[0].mxu0
    %v736 = vpop.f32.mrb[0].mxu0
    %v737 = vadd.f32 0.0, %v736
    %v738 = vpop.f32.mrb[0].mxu0
    %739 = vmatprep.mubr.bf16.mxu0 0
    %740 = vmatmul.mubr.bf16.gmra.mrb[0].mxu0 %v685
    %v741 = vpop.f32.mrb[0].mxu0
    %v742 = vadd.f32 0.0, %v741
    %v743 = vpop.f32.mrb[0].mxu0
    %v744 = vpop.f32.mrb[0].mxu0
    %v745 = vadd.f32 0.0, %v744
    %v746 = vpop.f32.mrb[0].mxu0
    %747 = vmatprep.mubr.bf16.mxu0 0
    %748 = vmatmul.mubr.bf16.gmra.mrb[0].mxu0 %v686
    %v749 = vpop.f32.mrb[0].mxu0
    %v750 = vadd.f32 0.0, %v749
    %v751 = vpop.f32.mrb[0].mxu0
    %v752 = vpop.f32.mrb[0].mxu0
    %v753 = vadd.f32 0.0, %v752
    %v754 = vpop.f32.mrb[0].mxu0
    %755 = vmatprep.mubr.bf16.mxu0 0
    %756 = vmatmul.mubr.bf16.gmra.mrb[0].mxu0 %v687
    %v757 = vpop.f32.mrb[0].mxu0
    %v758 = vadd.f32 0.0, %v757
    %v759 = vpop.f32.mrb[0].mxu0
    %v760 = vpop.f32.mrb[0].mxu0
    %v761 = vadd.f32 0.0, %v760
    %v762 = vpop.f32.mrb[0].mxu0
    %763 = vmatprep.mubr.bf16.mxu0 0
    %764 = vmatmul.mubr.bf16.gmra.mrb[0].mxu0 %v688
    %v765 = vpop.f32.mrb[0].mxu0
    %v766 = vadd.f32 0.0, %v765
    %v767 = vpop.f32.mrb[0].mxu0
    %v768 = vpop.f32.mrb[0].mxu0
    %v769 = vadd.f32 0.0, %v768
    %v770 = vpop.f32.mrb[0].mxu0
    %771 = vmatprep.mubr.bf16.mxu0 0
    %772 = vmatmul.mubr.bf16.gmra.mrb[0].mxu0 %v689
    %v773 = vpop.f32.mrb[0].mxu0
    %v774 = vadd.f32 0.0, %v773
    %v775 = vpop.f32.mrb[0].mxu0
    %v776 = vpop.f32.mrb[0].mxu0
    %v777 = vadd.f32 0.0, %v776
    %v778 = vpop.f32.mrb[0].mxu0
    %779 = vmatprep.mubr.bf16.mxu0 0
    %780 = vmatmul.mubr.bf16.gmra.mrb[0].mxu0 %v690
    %v781 = vpop.f32.mrb[0].mxu0
    %v782 = vadd.f32 0.0, %v781
    %v783 = vpop.f32.mrb[0].mxu0
    %v784 = vpop.f32.mrb[0].mxu0
    %v785 = vadd.f32 0.0, %v784
    %v786 = vpop.f32.mrb[0].mxu0
    %787 = vdwg.mxu0
    %788 = vst [vmem:[#allocation2] sm:$0xff] %v726
    %789 = vst [vmem:[#allocation2 + $0x8] sm:$0xff] %v729
    %790 = vst [vmem:[#allocation2 + $0x10] sm:$0xff] %v734
    %791 = vst [vmem:[#allocation2 + $0x18] sm:$0xff] %v737
    %792 = vst [vmem:[#allocation2 + $0x20] sm:$0xff] %v742
    %793 = vst [vmem:[#allocation2 + $0x28] sm:$0xff] %v745
    %794 = vst [vmem:[#allocation2 + $0x30] sm:$0xff] %v750
    %795 = vst [vmem:[#allocation2 + $0x38] sm:$0xff] %v753
    %796 = vst [vmem:[#allocation2 + $0x40] sm:$0xff] %v758
    %797 = vst [vmem:[#allocation2 + $0x48] sm:$0xff] %v761
    %798 = vst [vmem:[#allocation2 + $0x50] sm:$0xff] %v766
    %799 = vst [vmem:[#allocation2 + $0x58] sm:$0xff] %v769
    %800 = vst [vmem:[#allocation2 + $0x60] sm:$0xff] %v774
    %801 = vst [vmem:[#allocation2 + $0x68] sm:$0xff] %v777
    %802 = vst [vmem:[#allocation2 + $0x70] sm:$0xff] %v782
    %803 = vst [vmem:[#allocation2 + $0x78] sm:$0xff] %v785
    %s804 = scalar_lea.vmem [#allocation8], 64
    %v805 = vld [vmem:[%s804] sm:$0xff]
    %v806 = vld [vmem:[%s804 + $0x8] sm:$0xff]
    %v807 = vld [vmem:[%s804 + $0x10] sm:$0xff]
    %v808 = vld [vmem:[%s804 + $0x18] sm:$0xff]
    %809 = vst.msk [vmem:[#allocation4] sm:$0xff] %vm97, %v805
    %810 = vst.msk [vmem:[#allocation4 + $0x8] sm:$0xff] %vm97, %v806
    %811 = vst.msk [vmem:[#allocation4 + $0x10] sm:$0xff] %vm97, %v807
    %812 = vst.msk [vmem:[#allocation4 + $0x18] sm:$0xff] %vm97, %v808
    %v813 = vld [vmem:[#allocation4] sm:$0xff]
    %v814 = vld [vmem:[#allocation4 + $0x8] sm:$0xff]
    %v815 = vld [vmem:[#allocation4 + $0x10] sm:$0xff]
    %v816 = vld [vmem:[#allocation4 + $0x18] sm:$0xff]
    %v817 = vld [vmem:[#allocation4 + $0x20] sm:$0xff]
    %v818 = vld [vmem:[#allocation4 + $0x28] sm:$0xff]
    %v819 = vld [vmem:[#allocation4 + $0x30] sm:$0xff]
    %v820 = vld [vmem:[#allocation4 + $0x38] sm:$0xff]
    %v821 = vld [vmem:[#allocation4 + $0x40] sm:$0xff]
    %v822 = vld [vmem:[#allocation4 + $0x48] sm:$0xff]
    %v823 = vld [vmem:[#allocation4 + $0x50] sm:$0xff]
    %v824 = vld [vmem:[#allocation4 + $0x58] sm:$0xff]
    %v825 = vld [vmem:[#allocation4 + $0x60] sm:$0xff]
    %v826 = vld [vmem:[#allocation4 + $0x68] sm:$0xff]
    %v827 = vld [vmem:[#allocation4 + $0x70] sm:$0xff]
    %v828 = vld [vmem:[#allocation4 + $0x78] sm:$0xff]
    %v829 = vpack.c.bf16 %v814, %v813
    %v830 = vpack.c.bf16 %v816, %v815
    %v831 = vpack.c.bf16 %v818, %v817
    %v832 = vpack.c.bf16 %v820, %v819
    %v833 = vpack.c.bf16 %v822, %v821
    %v834 = vpack.c.bf16 %v824, %v823
    %v835 = vpack.c.bf16 %v826, %v825
    %v836 = vpack.c.bf16 %v828, %v827
    %v837 = vld [vmem:[#allocation2] sm:$0xff]
    %v838 = vld [vmem:[#allocation2 + $0x8] sm:$0xff]
    %v839 = vld [vmem:[#allocation2 + $0x10] sm:$0xff]
    %v840 = vld [vmem:[#allocation2 + $0x18] sm:$0xff]
    %v841 = vld [vmem:[#allocation2 + $0x20] sm:$0xff]
    %v842 = vld [vmem:[#allocation2 + $0x28] sm:$0xff]
    %v843 = vld [vmem:[#allocation2 + $0x30] sm:$0xff]
    %v844 = vld [vmem:[#allocation2 + $0x38] sm:$0xff]
    %v845 = vld [vmem:[#allocation2 + $0x40] sm:$0xff]
    %v846 = vld [vmem:[#allocation2 + $0x48] sm:$0xff]
    %v847 = vld [vmem:[#allocation2 + $0x50] sm:$0xff]
    %v848 = vld [vmem:[#allocation2 + $0x58] sm:$0xff]
    %v849 = vld [vmem:[#allocation2 + $0x60] sm:$0xff]
    %v850 = vld [vmem:[#allocation2 + $0x68] sm:$0xff]
    %v851 = vld [vmem:[#allocation2 + $0x70] sm:$0xff]
    %v852 = vld [vmem:[#allocation2 + $0x78] sm:$0xff]
    %v853 = vpack.c.bf16 %v838, %v837
    %v854 = vpack.c.bf16 %v840, %v839
    %v855 = vpack.c.bf16 %v842, %v841
    %v856 = vpack.c.bf16 %v844, %v843
    %v857 = vpack.c.bf16 %v846, %v845
    %v858 = vpack.c.bf16 %v848, %v847
    %v859 = vpack.c.bf16 %v850, %v849
    %v860 = vpack.c.bf16 %v852, %v851
    %861 = vmatprep.subr.bf16.mxu0 0
    %862 = vmatpush1.bf16.msra.mxu0 %v853
    %863 = vmatprep.subr.bf16.mxu0 0
    %864 = vmatpush1.bf16.msra.mxu0 %v854
    %865 = vmatprep.subr.bf16.mxu0 0
    %866 = vmatpush1.bf16.msra.mxu0 %v855
    %867 = vmatprep.subr.bf16.mxu0 0
    %868 = vmatpush1.bf16.msra.mxu0 %v856
    %869 = vmatprep.subr.bf16.mxu0 0
    %870 = vmatpush1.bf16.msra.mxu0 %v857
    %871 = vmatprep.subr.bf16.mxu0 0
    %872 = vmatpush1.bf16.msra.mxu0 %v858
    %873 = vmatprep.subr.bf16.mxu0 0
    %874 = vmatpush1.bf16.msra.mxu0 %v859
    %875 = vmatprep.subr.bf16.mxu0 0
    %876 = vmatpush1.bf16.msra.mxu0 %v860
    %877 = vmatprep.subr.bf16.mxu0 0
    %878 = vmatpush1.bf16.msra.mxu0 0
    %879 = vmatprep.subr.bf16.mxu0 0
    %880 = vmatpush1.bf16.msra.mxu0 0
    %881 = vmatprep.subr.bf16.mxu0 0
    %882 = vmatpush1.bf16.msra.mxu0 0
    %883 = vmatprep.subr.bf16.mxu0 0
    %884 = vmatpush1.bf16.msra.mxu0 0
    %885 = vmatprep.subr.bf16.mxu0 0
    %886 = vmatpush1.bf16.msra.mxu0 0
    %887 = vmatprep.subr.bf16.mxu0 0
    %888 = vmatpush1.bf16.msra.mxu0 0
    %889 = vmatprep.subr.bf16.mxu0 0
    %890 = vmatpush1.bf16.msra.mxu0 0
    %891 = vmatprep.subr.bf16.mxu0 0
    %892 = vmatpush1.bf16.msra.mxu0 0
    %893 = vmatprep.mubr.bf16.mxu0 0
    %894 = vmatmul.mubr.bf16.gmra.mrb[0].mxu0 %v829
    %v895 = vpop.f32.mrb[0].mxu0
    %v896 = vadd.f32 0.0, %v895
    %v897 = vpop.f32.mrb[0].mxu0
    %v898 = vpop.f32.mrb[0].mxu0
    %v899 = vadd.f32 0.0, %v898
    %v900 = vpop.f32.mrb[0].mxu0
    %901 = vmatprep.mubr.bf16.mxu0 0
    %902 = vmatmul.mubr.bf16.gmra.mrb[0].mxu0 %v830
    %v903 = vpop.f32.mrb[0].mxu0
    %v904 = vadd.f32 0.0, %v903
    %v905 = vpop.f32.mrb[0].mxu0
    %v906 = vpop.f32.mrb[0].mxu0
    %v907 = vadd.f32 0.0, %v906
    %v908 = vpop.f32.mrb[0].mxu0
    %909 = vmatprep.mubr.bf16.mxu0 0
    %910 = vmatmul.mubr.bf16.gmra.mrb[0].mxu0 %v831
    %v911 = vpop.f32.mrb[0].mxu0
    %v912 = vadd.f32 0.0, %v911
    %v913 = vpop.f32.mrb[0].mxu0
    %v914 = vpop.f32.mrb[0].mxu0
    %v915 = vadd.f32 0.0, %v914
    %v916 = vpop.f32.mrb[0].mxu0
    %917 = vmatprep.mubr.bf16.mxu0 0
    %918 = vmatmul.mubr.bf16.gmra.mrb[0].mxu0 %v832
    %v919 = vpop.f32.mrb[0].mxu0
    %v920 = vadd.f32 0.0, %v919
    %v921 = vpop.f32.mrb[0].mxu0
    %v922 = vpop.f32.mrb[0].mxu0
    %v923 = vadd.f32 0.0, %v922
    %v924 = vpop.f32.mrb[0].mxu0
    %925 = vmatprep.mubr.bf16.mxu0 0
    %926 = vmatmul.mubr.bf16.gmra.mrb[0].mxu0 %v833
    %v927 = vpop.f32.mrb[0].mxu0
    %v928 = vadd.f32 0.0, %v927
    %v929 = vpop.f32.mrb[0].mxu0
    %v930 = vpop.f32.mrb[0].mxu0
    %v931 = vadd.f32 0.0, %v930
    %v932 = vpop.f32.mrb[0].mxu0
    %933 = vmatprep.mubr.bf16.mxu0 0
    %934 = vmatmul.mubr.bf16.gmra.mrb[0].mxu0 %v834
    %v935 = vpop.f32.mrb[0].mxu0
    %v936 = vadd.f32 0.0, %v935
    %v937 = vpop.f32.mrb[0].mxu0
    %v938 = vpop.f32.mrb[0].mxu0
    %v939 = vadd.f32 0.0, %v938
    %v940 = vpop.f32.mrb[0].mxu0
    %941 = vmatprep.mubr.bf16.mxu0 0
    %942 = vmatmul.mubr.bf16.gmra.mrb[0].mxu0 %v835
    %v943 = vpop.f32.mrb[0].mxu0
    %v944 = vadd.f32 0.0, %v943
    %v945 = vpop.f32.mrb[0].mxu0
    %v946 = vpop.f32.mrb[0].mxu0
    %v947 = vadd.f32 0.0, %v946
    %v948 = vpop.f32.mrb[0].mxu0
    %949 = vmatprep.mubr.bf16.mxu0 0
    %950 = vmatmul.mubr.bf16.gmra.mrb[0].mxu0 %v836
    %v951 = vpop.f32.mrb[0].mxu0
    %v952 = vadd.f32 0.0, %v951
    %v953 = vpop.f32.mrb[0].mxu0
    %v954 = vpop.f32.mrb[0].mxu0
    %v955 = vadd.f32 0.0, %v954
    %v956 = vpop.f32.mrb[0].mxu0
    %957 = vdwg.mxu0
    %v958 = vld [vmem:[#allocation3] sm:$0xff]
    %v959 = vld [vmem:[#allocation3 + $0x8] sm:$0xff]
    %v960 = vld [vmem:[#allocation3 + $0x10] sm:$0xff]
    %v961 = vld [vmem:[#allocation3 + $0x18] sm:$0xff]
    %v962 = vld [vmem:[#allocation3 + $0x20] sm:$0xff]
    %v963 = vld [vmem:[#allocation3 + $0x28] sm:$0xff]
    %v964 = vld [vmem:[#allocation3 + $0x30] sm:$0xff]
    %v965 = vld [vmem:[#allocation3 + $0x38] sm:$0xff]
    %v966 = vld [vmem:[#allocation3 + $0x40] sm:$0xff]
    %v967 = vld [vmem:[#allocation3 + $0x48] sm:$0xff]
    %v968 = vld [vmem:[#allocation3 + $0x50] sm:$0xff]
    %v969 = vld [vmem:[#allocation3 + $0x58] sm:$0xff]
    %v970 = vld [vmem:[#allocation3 + $0x60] sm:$0xff]
    %v971 = vld [vmem:[#allocation3 + $0x68] sm:$0xff]
    %v972 = vld [vmem:[#allocation3 + $0x70] sm:$0xff]
    %v973 = vld [vmem:[#allocation3 + $0x78] sm:$0xff]
    %v974 = vpack.c.bf16 %v959, %v958
    %v975 = vpack.c.bf16 %v961, %v960
    %v976 = vpack.c.bf16 %v963, %v962
    %v977 = vpack.c.bf16 %v965, %v964
    %v978 = vpack.c.bf16 %v967, %v966
    %v979 = vpack.c.bf16 %v969, %v968
    %v980 = vpack.c.bf16 %v971, %v970
    %v981 = vpack.c.bf16 %v973, %v972
    %982 = vmatprep.subr.bf16.mxu0 0
    %983 = vmatpush1.bf16.msra.mxu0 %v974
    %984 = vmatprep.subr.bf16.mxu0 0
    %985 = vmatpush1.bf16.msra.mxu0 %v975
    %986 = vmatprep.subr.bf16.mxu0 0
    %987 = vmatpush1.bf16.msra.mxu0 %v976
    %988 = vmatprep.subr.bf16.mxu0 0
    %989 = vmatpush1.bf16.msra.mxu0 %v977
    %990 = vmatprep.subr.bf16.mxu0 0
    %991 = vmatpush1.bf16.msra.mxu0 %v978
    %992 = vmatprep.subr.bf16.mxu0 0
    %993 = vmatpush1.bf16.msra.mxu0 %v979
    %994 = vmatprep.subr.bf16.mxu0 0
    %995 = vmatpush1.bf16.msra.mxu0 %v980
    %996 = vmatprep.subr.bf16.mxu0 0
    %997 = vmatpush1.bf16.msra.mxu0 %v981
    %998 = vmatprep.subr.bf16.mxu0 0
    %999 = vmatpush1.bf16.msra.mxu0 0
    %1000 = vmatprep.subr.bf16.mxu0 0
    %1001 = vmatpush1.bf16.msra.mxu0 0
    %1002 = vmatprep.subr.bf16.mxu0 0
    %1003 = vmatpush1.bf16.msra.mxu0 0
    %1004 = vmatprep.subr.bf16.mxu0 0
    %1005 = vmatpush1.bf16.msra.mxu0 0
    %1006 = vmatprep.subr.bf16.mxu0 0
    %1007 = vmatpush1.bf16.msra.mxu0 0
    %1008 = vmatprep.subr.bf16.mxu0 0
    %1009 = vmatpush1.bf16.msra.mxu0 0
    %1010 = vmatprep.subr.bf16.mxu0 0
    %1011 = vmatpush1.bf16.msra.mxu0 0
    %1012 = vmatprep.subr.bf16.mxu0 0
    %1013 = vmatpush1.bf16.msra.mxu0 0
    %1014 = vmatprep.mubr.bf16.mxu0 0
    %1015 = vmatmul.mubr.bf16.gmra.mrb[0].mxu0 %v829
    %v1016 = vpop.f32.mrb[0].mxu0
    %v1017 = vadd.f32 0.0, %v1016
    %v1018 = vpop.f32.mrb[0].mxu0
    %v1019 = vpop.f32.mrb[0].mxu0
    %v1020 = vadd.f32 0.0, %v1019
    %v1021 = vpop.f32.mrb[0].mxu0
    %1022 = vmatprep.mubr.bf16.mxu0 0
    %1023 = vmatmul.mubr.bf16.gmra.mrb[0].mxu0 %v830
    %v1024 = vpop.f32.mrb[0].mxu0
    %v1025 = vadd.f32 0.0, %v1024
    %v1026 = vpop.f32.mrb[0].mxu0
    %v1027 = vpop.f32.mrb[0].mxu0
    %v1028 = vadd.f32 0.0, %v1027
    %v1029 = vpop.f32.mrb[0].mxu0
    %1030 = vmatprep.mubr.bf16.mxu0 0
    %1031 = vmatmul.mubr.bf16.gmra.mrb[0].mxu0 %v831
    %v1032 = vpop.f32.mrb[0].mxu0
    %v1033 = vadd.f32 0.0, %v1032
    %v1034 = vpop.f32.mrb[0].mxu0
    %v1035 = vpop.f32.mrb[0].mxu0
    %v1036 = vadd.f32 0.0, %v1035
    %v1037 = vpop.f32.mrb[0].mxu0
    %1038 = vmatprep.mubr.bf16.mxu0 0
    %1039 = vmatmul.mubr.bf16.gmra.mrb[0].mxu0 %v832
    %v1040 = vpop.f32.mrb[0].mxu0
    %v1041 = vadd.f32 0.0, %v1040
    %v1042 = vpop.f32.mrb[0].mxu0
    %v1043 = vpop.f32.mrb[0].mxu0
    %v1044 = vadd.f32 0.0, %v1043
    %v1045 = vpop.f32.mrb[0].mxu0
    %1046 = vmatprep.mubr.bf16.mxu0 0
    %1047 = vmatmul.mubr.bf16.gmra.mrb[0].mxu0 %v833
    %v1048 = vpop.f32.mrb[0].mxu0
    %v1049 = vadd.f32 0.0, %v1048
    %v1050 = vpop.f32.mrb[0].mxu0
    %v1051 = vpop.f32.mrb[0].mxu0
    %v1052 = vadd.f32 0.0, %v1051
    %v1053 = vpop.f32.mrb[0].mxu0
    %1054 = vmatprep.mubr.bf16.mxu0 0
    %1055 = vmatmul.mubr.bf16.gmra.mrb[0].mxu0 %v834
    %v1056 = vpop.f32.mrb[0].mxu0
    %v1057 = vadd.f32 0.0, %v1056
    %v1058 = vpop.f32.mrb[0].mxu0
    %v1059 = vpop.f32.mrb[0].mxu0
    %v1060 = vadd.f32 0.0, %v1059
    %v1061 = vpop.f32.mrb[0].mxu0
    %1062 = vmatprep.mubr.bf16.mxu0 0
    %1063 = vmatmul.mubr.bf16.gmra.mrb[0].mxu0 %v835
    %v1064 = vpop.f32.mrb[0].mxu0
    %v1065 = vadd.f32 0.0, %v1064
    %v1066 = vpop.f32.mrb[0].mxu0
    %v1067 = vpop.f32.mrb[0].mxu0
    %v1068 = vadd.f32 0.0, %v1067
    %v1069 = vpop.f32.mrb[0].mxu0
    %1070 = vmatprep.mubr.bf16.mxu0 0
    %1071 = vmatmul.mubr.bf16.gmra.mrb[0].mxu0 %v836
    %v1072 = vpop.f32.mrb[0].mxu0
    %v1073 = vadd.f32 0.0, %v1072
    %v1074 = vpop.f32.mrb[0].mxu0
    %v1075 = vpop.f32.mrb[0].mxu0
    %v1076 = vadd.f32 0.0, %v1075
    %v1077 = vpop.f32.mrb[0].mxu0
    %1078 = vdwg.mxu0
    %1079 = vst [vmem:[#allocation3] sm:$0xff] %v1017
    %1080 = vst [vmem:[#allocation3 + $0x8] sm:$0xff] %v1020
    %1081 = vst [vmem:[#allocation3 + $0x10] sm:$0xff] %v1025
    %1082 = vst [vmem:[#allocation3 + $0x18] sm:$0xff] %v1028
    %1083 = vst [vmem:[#allocation3 + $0x20] sm:$0xff] %v1033
    %1084 = vst [vmem:[#allocation3 + $0x28] sm:$0xff] %v1036
    %1085 = vst [vmem:[#allocation3 + $0x30] sm:$0xff] %v1041
    %1086 = vst [vmem:[#allocation3 + $0x38] sm:$0xff] %v1044
    %1087 = vst [vmem:[#allocation3 + $0x40] sm:$0xff] %v1049
    %1088 = vst [vmem:[#allocation3 + $0x48] sm:$0xff] %v1052
    %1089 = vst [vmem:[#allocation3 + $0x50] sm:$0xff] %v1057
    %1090 = vst [vmem:[#allocation3 + $0x58] sm:$0xff] %v1060
    %1091 = vst [vmem:[#allocation3 + $0x60] sm:$0xff] %v1065
    %1092 = vst [vmem:[#allocation3 + $0x68] sm:$0xff] %v1068
    %1093 = vst [vmem:[#allocation3 + $0x70] sm:$0xff] %v1073
    %1094 = vst [vmem:[#allocation3 + $0x78] sm:$0xff] %v1076
    %v1095 = vpack.c.bf16 %v899, %v896
    %v1096 = vpack.c.bf16 %v907, %v904
    %v1097 = vpack.c.bf16 %v915, %v912
    %v1098 = vpack.c.bf16 %v923, %v920
    %v1099 = vpack.c.bf16 %v931, %v928
    %v1100 = vpack.c.bf16 %v939, %v936
    %v1101 = vpack.c.bf16 %v947, %v944
    %v1102 = vpack.c.bf16 %v955, %v952
    %1103 = vmatprep.subr.bf16.mxu0 0
    %1104 = vmatpush1.bf16.xpose.msra.mxu0 %v829
    %1105 = vmatprep.subr.bf16.mxu0 0
    %1106 = vmatpush1.bf16.xpose.msra.mxu0 %v830
    %1107 = vmatprep.subr.bf16.mxu0 0
    %1108 = vmatpush1.bf16.xpose.msra.mxu0 %v831
    %1109 = vmatprep.subr.bf16.mxu0 0
    %1110 = vmatpush1.bf16.xpose.msra.mxu0 %v832
    %1111 = vmatprep.subr.bf16.mxu0 0
    %1112 = vmatpush1.bf16.xpose.msra.mxu0 %v833
    %1113 = vmatprep.subr.bf16.mxu0 0
    %1114 = vmatpush1.bf16.xpose.msra.mxu0 %v834
    %1115 = vmatprep.subr.bf16.mxu0 0
    %1116 = vmatpush1.bf16.xpose.msra.mxu0 %v835
    %1117 = vmatprep.subr.bf16.mxu0 0
    %1118 = vmatpush1.bf16.xpose.msra.mxu0 %v836
    %1119 = vmatprep.subr.bf16.mxu0 0
    %1120 = vmatpush1.bf16.xpose.msra.mxu0 0
    %1121 = vmatprep.subr.bf16.mxu0 0
    %1122 = vmatpush1.bf16.xpose.msra.mxu0 0
    %1123 = vmatprep.subr.bf16.mxu0 0
    %1124 = vmatpush1.bf16.xpose.msra.mxu0 0
    %1125 = vmatprep.subr.bf16.mxu0 0
    %1126 = vmatpush1.bf16.xpose.msra.mxu0 0
    %1127 = vmatprep.subr.bf16.mxu0 0
    %1128 = vmatpush1.bf16.xpose.msra.mxu0 0
    %1129 = vmatprep.subr.bf16.mxu0 0
    %1130 = vmatpush1.bf16.xpose.msra.mxu0 0
    %1131 = vmatprep.subr.bf16.mxu0 0
    %1132 = vmatpush1.bf16.xpose.msra.mxu0 0
    %1133 = vmatprep.subr.bf16.mxu0 0
    %1134 = vmatpush1.bf16.xpose.msra.mxu0 0
    %1135 = vmatprep.mubr.bf16.mxu0 0
    %1136 = vmatmul.mubr.bf16.gmra.mrb[0].mxu0 %v1095
    %v1137 = vpop.f32.mrb[0].mxu0
    %v1138 = vadd.f32 0.0, %v1137
    %v1139 = vpop.f32.mrb[0].mxu0
    %v1140 = vpop.f32.mrb[0].mxu0
    %v1141 = vadd.f32 0.0, %v1140
    %v1142 = vpop.f32.mrb[0].mxu0
    %1143 = vmatprep.mubr.bf16.mxu0 0
    %1144 = vmatmul.mubr.bf16.gmra.mrb[0].mxu0 %v1096
    %v1145 = vpop.f32.mrb[0].mxu0
    %v1146 = vadd.f32 0.0, %v1145
    %v1147 = vpop.f32.mrb[0].mxu0
    %v1148 = vpop.f32.mrb[0].mxu0
    %v1149 = vadd.f32 0.0, %v1148
    %v1150 = vpop.f32.mrb[0].mxu0
    %1151 = vmatprep.mubr.bf16.mxu0 0
    %1152 = vmatmul.mubr.bf16.gmra.mrb[0].mxu0 %v1097
    %v1153 = vpop.f32.mrb[0].mxu0
    %v1154 = vadd.f32 0.0, %v1153
    %v1155 = vpop.f32.mrb[0].mxu0
    %v1156 = vpop.f32.mrb[0].mxu0
    %v1157 = vadd.f32 0.0, %v1156
    %v1158 = vpop.f32.mrb[0].mxu0
    %1159 = vmatprep.mubr.bf16.mxu0 0
    %1160 = vmatmul.mubr.bf16.gmra.mrb[0].mxu0 %v1098
    %v1161 = vpop.f32.mrb[0].mxu0
    %v1162 = vadd.f32 0.0, %v1161
    %v1163 = vpop.f32.mrb[0].mxu0
    %v1164 = vpop.f32.mrb[0].mxu0
    %v1165 = vadd.f32 0.0, %v1164
    %v1166 = vpop.f32.mrb[0].mxu0
    %1167 = vmatprep.mubr.bf16.mxu0 0
    %1168 = vmatmul.mubr.bf16.gmra.mrb[0].mxu0 %v1099
    %v1169 = vpop.f32.mrb[0].mxu0
    %v1170 = vadd.f32 0.0, %v1169
    %v1171 = vpop.f32.mrb[0].mxu0
    %v1172 = vpop.f32.mrb[0].mxu0
    %v1173 = vadd.f32 0.0, %v1172
    %v1174 = vpop.f32.mrb[0].mxu0
    %1175 = vmatprep.mubr.bf16.mxu0 0
    %1176 = vmatmul.mubr.bf16.gmra.mrb[0].mxu0 %v1100
    %v1177 = vpop.f32.mrb[0].mxu0
    %v1178 = vadd.f32 0.0, %v1177
    %v1179 = vpop.f32.mrb[0].mxu0
    %v1180 = vpop.f32.mrb[0].mxu0
    %v1181 = vadd.f32 0.0, %v1180
    %v1182 = vpop.f32.mrb[0].mxu0
    %1183 = vmatprep.mubr.bf16.mxu0 0
    %1184 = vmatmul.mubr.bf16.gmra.mrb[0].mxu0 %v1101
    %v1185 = vpop.f32.mrb[0].mxu0
    %v1186 = vadd.f32 0.0, %v1185
    %v1187 = vpop.f32.mrb[0].mxu0
    %v1188 = vpop.f32.mrb[0].mxu0
    %v1189 = vadd.f32 0.0, %v1188
    %v1190 = vpop.f32.mrb[0].mxu0
    %1191 = vmatprep.mubr.bf16.mxu0 0
    %1192 = vmatmul.mubr.bf16.gmra.mrb[0].mxu0 %v1102
    %v1193 = vpop.f32.mrb[0].mxu0
    %v1194 = vadd.f32 0.0, %v1193
    %v1195 = vpop.f32.mrb[0].mxu0
    %v1196 = vpop.f32.mrb[0].mxu0
    %v1197 = vadd.f32 0.0, %v1196
    %v1198 = vpop.f32.mrb[0].mxu0
    %1199 = vdwg.mxu0
    %1200 = vst [vmem:[#allocation2] sm:$0xff] %v1138
    %1201 = vst [vmem:[#allocation2 + $0x8] sm:$0xff] %v1141
    %1202 = vst [vmem:[#allocation2 + $0x10] sm:$0xff] %v1146
    %1203 = vst [vmem:[#allocation2 + $0x18] sm:$0xff] %v1149
    %1204 = vst [vmem:[#allocation2 + $0x20] sm:$0xff] %v1154
    %1205 = vst [vmem:[#allocation2 + $0x28] sm:$0xff] %v1157
    %1206 = vst [vmem:[#allocation2 + $0x30] sm:$0xff] %v1162
    %1207 = vst [vmem:[#allocation2 + $0x38] sm:$0xff] %v1165
    %1208 = vst [vmem:[#allocation2 + $0x40] sm:$0xff] %v1170
    %1209 = vst [vmem:[#allocation2 + $0x48] sm:$0xff] %v1173
    %1210 = vst [vmem:[#allocation2 + $0x50] sm:$0xff] %v1178
    %1211 = vst [vmem:[#allocation2 + $0x58] sm:$0xff] %v1181
    %1212 = vst [vmem:[#allocation2 + $0x60] sm:$0xff] %v1186
    %1213 = vst [vmem:[#allocation2 + $0x68] sm:$0xff] %v1189
    %1214 = vst [vmem:[#allocation2 + $0x70] sm:$0xff] %v1194
    %1215 = vst [vmem:[#allocation2 + $0x78] sm:$0xff] %v1197
    %s1216 = scalar_lea.vmem [#allocation8], 96
    %v1217 = vld [vmem:[%s1216] sm:$0xff]
    %v1218 = vld [vmem:[%s1216 + $0x8] sm:$0xff]
    %v1219 = vld [vmem:[%s1216 + $0x10] sm:$0xff]
    %v1220 = vld [vmem:[%s1216 + $0x18] sm:$0xff]
    %1221 = vst.msk [vmem:[#allocation4] sm:$0xff] %vm97, %v1217
    %1222 = vst.msk [vmem:[#allocation4 + $0x8] sm:$0xff] %vm97, %v1218
    %1223 = vst.msk [vmem:[#allocation4 + $0x10] sm:$0xff] %vm97, %v1219
    %1224 = vst.msk [vmem:[#allocation4 + $0x18] sm:$0xff] %vm97, %v1220
    %v1225 = vld [vmem:[#allocation4] sm:$0xff]
    %v1226 = vld [vmem:[#allocation4 + $0x8] sm:$0xff]
    %v1227 = vld [vmem:[#allocation4 + $0x10] sm:$0xff]
    %v1228 = vld [vmem:[#allocation4 + $0x18] sm:$0xff]
    %v1229 = vld [vmem:[#allocation4 + $0x20] sm:$0xff]
    %v1230 = vld [vmem:[#allocation4 + $0x28] sm:$0xff]
    %v1231 = vld [vmem:[#allocation4 + $0x30] sm:$0xff]
    %v1232 = vld [vmem:[#allocation4 + $0x38] sm:$0xff]
    %v1233 = vld [vmem:[#allocation4 + $0x40] sm:$0xff]
    %v1234 = vld [vmem:[#allocation4 + $0x48] sm:$0xff]
    %v1235 = vld [vmem:[#allocation4 + $0x50] sm:$0xff]
    %v1236 = vld [vmem:[#allocation4 + $0x58] sm:$0xff]
    %v1237 = vld [vmem:[#allocation4 + $0x60] sm:$0xff]
    %v1238 = vld [vmem:[#allocation4 + $0x68] sm:$0xff]
    %v1239 = vld [vmem:[#allocation4 + $0x70] sm:$0xff]
    %v1240 = vld [vmem:[#allocation4 + $0x78] sm:$0xff]
    %v1241 = vpack.c.bf16 %v1226, %v1225
    %v1242 = vpack.c.bf16 %v1228, %v1227
    %v1243 = vpack.c.bf16 %v1230, %v1229
    %v1244 = vpack.c.bf16 %v1232, %v1231
    %v1245 = vpack.c.bf16 %v1234, %v1233
    %v1246 = vpack.c.bf16 %v1236, %v1235
    %v1247 = vpack.c.bf16 %v1238, %v1237
    %v1248 = vpack.c.bf16 %v1240, %v1239
    %v1249 = vld [vmem:[#allocation2] sm:$0xff]
    %v1250 = vld [vmem:[#allocation2 + $0x8] sm:$0xff]
    %v1251 = vld [vmem:[#allocation2 + $0x10] sm:$0xff]
    %v1252 = vld [vmem:[#allocation2 + $0x18] sm:$0xff]
    %v1253 = vld [vmem:[#allocation2 + $0x20] sm:$0xff]
    %v1254 = vld [vmem:[#allocation2 + $0x28] sm:$0xff]
    %v1255 = vld [vmem:[#allocation2 + $0x30] sm:$0xff]
    %v1256 = vld [vmem:[#allocation2 + $0x38] sm:$0xff]
    %v1257 = vld [vmem:[#allocation2 + $0x40] sm:$0xff]
    %v1258 = vld [vmem:[#allocation2 + $0x48] sm:$0xff]
    %v1259 = vld [vmem:[#allocation2 + $0x50] sm:$0xff]
    %v1260 = vld [vmem:[#allocation2 + $0x58] sm:$0xff]
    %v1261 = vld [vmem:[#allocation2 + $0x60] sm:$0xff]
    %v1262 = vld [vmem:[#allocation2 + $0x68] sm:$0xff]
    %v1263 = vld [vmem:[#allocation2 + $0x70] sm:$0xff]
    %v1264 = vld [vmem:[#allocation2 + $0x78] sm:$0xff]
    %v1265 = vpack.c.bf16 %v1250, %v1249
    %v1266 = vpack.c.bf16 %v1252, %v1251
    %v1267 = vpack.c.bf16 %v1254, %v1253
    %v1268 = vpack.c.bf16 %v1256, %v1255
    %v1269 = vpack.c.bf16 %v1258, %v1257
    %v1270 = vpack.c.bf16 %v1260, %v1259
    %v1271 = vpack.c.bf16 %v1262, %v1261
    %v1272 = vpack.c.bf16 %v1264, %v1263
    %1273 = vmatprep.subr.bf16.mxu0 0
    %1274 = vmatpush1.bf16.msra.mxu0 %v1265
    %1275 = vmatprep.subr.bf16.mxu0 0
    %1276 = vmatpush1.bf16.msra.mxu0 %v1266
    %1277 = vmatprep.subr.bf16.mxu0 0
    %1278 = vmatpush1.bf16.msra.mxu0 %v1267
    %1279 = vmatprep.subr.bf16.mxu0 0
    %1280 = vmatpush1.bf16.msra.mxu0 %v1268
    %1281 = vmatprep.subr.bf16.mxu0 0
    %1282 = vmatpush1.bf16.msra.mxu0 %v1269
    %1283 = vmatprep.subr.bf16.mxu0 0
    %1284 = vmatpush1.bf16.msra.mxu0 %v1270
    %1285 = vmatprep.subr.bf16.mxu0 0
    %1286 = vmatpush1.bf16.msra.mxu0 %v1271
    %1287 = vmatprep.subr.bf16.mxu0 0
    %1288 = vmatpush1.bf16.msra.mxu0 %v1272
    %1289 = vmatprep.subr.bf16.mxu0 0
    %1290 = vmatpush1.bf16.msra.mxu0 0
    %1291 = vmatprep.subr.bf16.mxu0 0
    %1292 = vmatpush1.bf16.msra.mxu0 0
    %1293 = vmatprep.subr.bf16.mxu0 0
    %1294 = vmatpush1.bf16.msra.mxu0 0
    %1295 = vmatprep.subr.bf16.mxu0 0
    %1296 = vmatpush1.bf16.msra.mxu0 0
    %1297 = vmatprep.subr.bf16.mxu0 0
    %1298 = vmatpush1.bf16.msra.mxu0 0
    %1299 = vmatprep.subr.bf16.mxu0 0
    %1300 = vmatpush1.bf16.msra.mxu0 0
    %1301 = vmatprep.subr.bf16.mxu0 0
    %1302 = vmatpush1.bf16.msra.mxu0 0
    %1303 = vmatprep.subr.bf16.mxu0 0
    %1304 = vmatpush1.bf16.msra.mxu0 0
    %1305 = vmatprep.mubr.bf16.mxu0 0
    %1306 = vmatmul.mubr.bf16.gmra.mrb[0].mxu0 %v1241
    %v1307 = vpop.f32.mrb[0].mxu0
    %v1308 = vadd.f32 0.0, %v1307
    %v1309 = vpop.f32.mrb[0].mxu0
    %v1310 = vpop.f32.mrb[0].mxu0
    %v1311 = vadd.f32 0.0, %v1310
    %v1312 = vpop.f32.mrb[0].mxu0
    %1313 = vmatprep.mubr.bf16.mxu0 0
    %1314 = vmatmul.mubr.bf16.gmra.mrb[0].mxu0 %v1242
    %v1315 = vpop.f32.mrb[0].mxu0
    %v1316 = vadd.f32 0.0, %v1315
    %v1317 = vpop.f32.mrb[0].mxu0
    %v1318 = vpop.f32.mrb[0].mxu0
    %v1319 = vadd.f32 0.0, %v1318
    %v1320 = vpop.f32.mrb[0].mxu0
    %1321 = vmatprep.mubr.bf16.mxu0 0
    %1322 = vmatmul.mubr.bf16.gmra.mrb[0].mxu0 %v1243
    %v1323 = vpop.f32.mrb[0].mxu0
    %v1324 = vadd.f32 0.0, %v1323
    %v1325 = vpop.f32.mrb[0].mxu0
    %v1326 = vpop.f32.mrb[0].mxu0
    %v1327 = vadd.f32 0.0, %v1326
    %v1328 = vpop.f32.mrb[0].mxu0
    %1329 = vmatprep.mubr.bf16.mxu0 0
    %1330 = vmatmul.mubr.bf16.gmra.mrb[0].mxu0 %v1244
    %v1331 = vpop.f32.mrb[0].mxu0
    %v1332 = vadd.f32 0.0, %v1331
    %v1333 = vpop.f32.mrb[0].mxu0
    %v1334 = vpop.f32.mrb[0].mxu0
    %v1335 = vadd.f32 0.0, %v1334
    %v1336 = vpop.f32.mrb[0].mxu0
    %1337 = vmatprep.mubr.bf16.mxu0 0
    %1338 = vmatmul.mubr.bf16.gmra.mrb[0].mxu0 %v1245
    %v1339 = vpop.f32.mrb[0].mxu0
    %v1340 = vadd.f32 0.0, %v1339
    %v1341 = vpop.f32.mrb[0].mxu0
    %v1342 = vpop.f32.mrb[0].mxu0
    %v1343 = vadd.f32 0.0, %v1342
    %v1344 = vpop.f32.mrb[0].mxu0
    %1345 = vmatprep.mubr.bf16.mxu0 0
    %1346 = vmatmul.mubr.bf16.gmra.mrb[0].mxu0 %v1246
    %v1347 = vpop.f32.mrb[0].mxu0
    %v1348 = vadd.f32 0.0, %v1347
    %v1349 = vpop.f32.mrb[0].mxu0
    %v1350 = vpop.f32.mrb[0].mxu0
    %v1351 = vadd.f32 0.0, %v1350
    %v1352 = vpop.f32.mrb[0].mxu0
    %1353 = vmatprep.mubr.bf16.mxu0 0
    %1354 = vmatmul.mubr.bf16.gmra.mrb[0].mxu0 %v1247
    %v1355 = vpop.f32.mrb[0].mxu0
    %v1356 = vadd.f32 0.0, %v1355
    %v1357 = vpop.f32.mrb[0].mxu0
    %v1358 = vpop.f32.mrb[0].mxu0
    %v1359 = vadd.f32 0.0, %v1358
    %v1360 = vpop.f32.mrb[0].mxu0
    %1361 = vmatprep.mubr.bf16.mxu0 0
    %1362 = vmatmul.mubr.bf16.gmra.mrb[0].mxu0 %v1248
    %v1363 = vpop.f32.mrb[0].mxu0
    %v1364 = vadd.f32 0.0, %v1363
    %v1365 = vpop.f32.mrb[0].mxu0
    %v1366 = vpop.f32.mrb[0].mxu0
    %v1367 = vadd.f32 0.0, %v1366
    %v1368 = vpop.f32.mrb[0].mxu0
    %1369 = vdwg.mxu0
    %v1370 = vld [vmem:[#allocation3] sm:$0xff]
    %v1371 = vld [vmem:[#allocation3 + $0x8] sm:$0xff]
    %v1372 = vld [vmem:[#allocation3 + $0x10] sm:$0xff]
    %v1373 = vld [vmem:[#allocation3 + $0x18] sm:$0xff]
    %v1374 = vld [vmem:[#allocation3 + $0x20] sm:$0xff]
    %v1375 = vld [vmem:[#allocation3 + $0x28] sm:$0xff]
    %v1376 = vld [vmem:[#allocation3 + $0x30] sm:$0xff]
    %v1377 = vld [vmem:[#allocation3 + $0x38] sm:$0xff]
    %v1378 = vld [vmem:[#allocation3 + $0x40] sm:$0xff]
    %v1379 = vld [vmem:[#allocation3 + $0x48] sm:$0xff]
    %v1380 = vld [vmem:[#allocation3 + $0x50] sm:$0xff]
    %v1381 = vld [vmem:[#allocation3 + $0x58] sm:$0xff]
    %v1382 = vld [vmem:[#allocation3 + $0x60] sm:$0xff]
    %v1383 = vld [vmem:[#allocation3 + $0x68] sm:$0xff]
    %v1384 = vld [vmem:[#allocation3 + $0x70] sm:$0xff]
    %v1385 = vld [vmem:[#allocation3 + $0x78] sm:$0xff]
    %v1386 = vpack.c.bf16 %v1371, %v1370
    %v1387 = vpack.c.bf16 %v1373, %v1372
    %v1388 = vpack.c.bf16 %v1375, %v1374
    %v1389 = vpack.c.bf16 %v1377, %v1376
    %v1390 = vpack.c.bf16 %v1379, %v1378
    %v1391 = vpack.c.bf16 %v1381, %v1380
    %v1392 = vpack.c.bf16 %v1383, %v1382
    %v1393 = vpack.c.bf16 %v1385, %v1384
    %1394 = vmatprep.subr.bf16.mxu0 0
    %1395 = vmatpush1.bf16.msra.mxu0 %v1386
    %1396 = vmatprep.subr.bf16.mxu0 0
    %1397 = vmatpush1.bf16.msra.mxu0 %v1387
    %1398 = vmatprep.subr.bf16.mxu0 0
    %1399 = vmatpush1.bf16.msra.mxu0 %v1388
    %1400 = vmatprep.subr.bf16.mxu0 0
    %1401 = vmatpush1.bf16.msra.mxu0 %v1389
    %1402 = vmatprep.subr.bf16.mxu0 0
    %1403 = vmatpush1.bf16.msra.mxu0 %v1390
    %1404 = vmatprep.subr.bf16.mxu0 0
    %1405 = vmatpush1.bf16.msra.mxu0 %v1391
    %1406 = vmatprep.subr.bf16.mxu0 0
    %1407 = vmatpush1.bf16.msra.mxu0 %v1392
    %1408 = vmatprep.subr.bf16.mxu0 0
    %1409 = vmatpush1.bf16.msra.mxu0 %v1393
    %1410 = vmatprep.subr.bf16.mxu0 0
    %1411 = vmatpush1.bf16.msra.mxu0 0
    %1412 = vmatprep.subr.bf16.mxu0 0
    %1413 = vmatpush1.bf16.msra.mxu0 0
    %1414 = vmatprep.subr.bf16.mxu0 0
    %1415 = vmatpush1.bf16.msra.mxu0 0
    %1416 = vmatprep.subr.bf16.mxu0 0
    %1417 = vmatpush1.bf16.msra.mxu0 0
    %1418 = vmatprep.subr.bf16.mxu0 0
    %1419 = vmatpush1.bf16.msra.mxu0 0
    %1420 = vmatprep.subr.bf16.mxu0 0
    %1421 = vmatpush1.bf16.msra.mxu0 0
    %1422 = vmatprep.subr.bf16.mxu0 0
    %1423 = vmatpush1.bf16.msra.mxu0 0
    %1424 = vmatprep.subr.bf16.mxu0 0
    %1425 = vmatpush1.bf16.msra.mxu0 0
    %1426 = vmatprep.mubr.bf16.mxu0 0
    %1427 = vmatmul.mubr.bf16.gmra.mrb[0].mxu0 %v1241
    %v1428 = vpop.f32.mrb[0].mxu0
    %v1429 = vadd.f32 0.0, %v1428
    %v1430 = vpop.f32.mrb[0].mxu0
    %v1431 = vpop.f32.mrb[0].mxu0
    %v1432 = vadd.f32 0.0, %v1431
    %v1433 = vpop.f32.mrb[0].mxu0
    %1434 = vmatprep.mubr.bf16.mxu0 0
    %1435 = vmatmul.mubr.bf16.gmra.mrb[0].mxu0 %v1242
    %v1436 = vpop.f32.mrb[0].mxu0
    %v1437 = vadd.f32 0.0, %v1436
    %v1438 = vpop.f32.mrb[0].mxu0
    %v1439 = vpop.f32.mrb[0].mxu0
    %v1440 = vadd.f32 0.0, %v1439
    %v1441 = vpop.f32.mrb[0].mxu0
    %1442 = vmatprep.mubr.bf16.mxu0 0
    %1443 = vmatmul.mubr.bf16.gmra.mrb[0].mxu0 %v1243
    %v1444 = vpop.f32.mrb[0].mxu0
    %v1445 = vadd.f32 0.0, %v1444
    %v1446 = vpop.f32.mrb[0].mxu0
    %v1447 = vpop.f32.mrb[0].mxu0
    %v1448 = vadd.f32 0.0, %v1447
    %v1449 = vpop.f32.mrb[0].mxu0
    %1450 = vmatprep.mubr.bf16.mxu0 0
    %1451 = vmatmul.mubr.bf16.gmra.mrb[0].mxu0 %v1244
    %v1452 = vpop.f32.mrb[0].mxu0
    %v1453 = vadd.f32 0.0, %v1452
    %v1454 = vpop.f32.mrb[0].mxu0
    %v1455 = vpop.f32.mrb[0].mxu0
    %v1456 = vadd.f32 0.0, %v1455
    %v1457 = vpop.f32.mrb[0].mxu0
    %1458 = vmatprep.mubr.bf16.mxu0 0
    %1459 = vmatmul.mubr.bf16.gmra.mrb[0].mxu0 %v1245
    %v1460 = vpop.f32.mrb[0].mxu0
    %v1461 = vadd.f32 0.0, %v1460
    %v1462 = vpop.f32.mrb[0].mxu0
    %v1463 = vpop.f32.mrb[0].mxu0
    %v1464 = vadd.f32 0.0, %v1463
    %v1465 = vpop.f32.mrb[0].mxu0
    %1466 = vmatprep.mubr.bf16.mxu0 0
    %1467 = vmatmul.mubr.bf16.gmra.mrb[0].mxu0 %v1246
    %v1468 = vpop.f32.mrb[0].mxu0
    %v1469 = vadd.f32 0.0, %v1468
    %v1470 = vpop.f32.mrb[0].mxu0
    %v1471 = vpop.f32.mrb[0].mxu0
    %v1472 = vadd.f32 0.0, %v1471
    %v1473 = vpop.f32.mrb[0].mxu0
    %1474 = vmatprep.mubr.bf16.mxu0 0
    %1475 = vmatmul.mubr.bf16.gmra.mrb[0].mxu0 %v1247
    %v1476 = vpop.f32.mrb[0].mxu0
    %v1477 = vadd.f32 0.0, %v1476
    %v1478 = vpop.f32.mrb[0].mxu0
    %v1479 = vpop.f32.mrb[0].mxu0
    %v1480 = vadd.f32 0.0, %v1479
    %v1481 = vpop.f32.mrb[0].mxu0
    %1482 = vmatprep.mubr.bf16.mxu0 0
    %1483 = vmatmul.mubr.bf16.gmra.mrb[0].mxu0 %v1248
    %v1484 = vpop.f32.mrb[0].mxu0
    %v1485 = vadd.f32 0.0, %v1484
    %v1486 = vpop.f32.mrb[0].mxu0
    %v1487 = vpop.f32.mrb[0].mxu0
    %v1488 = vadd.f32 0.0, %v1487
    %v1489 = vpop.f32.mrb[0].mxu0
    %1490 = vdwg.mxu0
    %1491 = vst [vmem:[#allocation3] sm:$0xff] %v1429
    %1492 = vst [vmem:[#allocation3 + $0x8] sm:$0xff] %v1432
    %1493 = vst [vmem:[#allocation3 + $0x10] sm:$0xff] %v1437
    %1494 = vst [vmem:[#allocation3 + $0x18] sm:$0xff] %v1440
    %1495 = vst [vmem:[#allocation3 + $0x20] sm:$0xff] %v1445
    %1496 = vst [vmem:[#allocation3 + $0x28] sm:$0xff] %v1448
    %1497 = vst [vmem:[#allocation3 + $0x30] sm:$0xff] %v1453
    %1498 = vst [vmem:[#allocation3 + $0x38] sm:$0xff] %v1456
    %1499 = vst [vmem:[#allocation3 + $0x40] sm:$0xff] %v1461
    %1500 = vst [vmem:[#allocation3 + $0x48] sm:$0xff] %v1464
    %1501 = vst [vmem:[#allocation3 + $0x50] sm:$0xff] %v1469
    %1502 = vst [vmem:[#allocation3 + $0x58] sm:$0xff] %v1472
    %1503 = vst [vmem:[#allocation3 + $0x60] sm:$0xff] %v1477
    %1504 = vst [vmem:[#allocation3 + $0x68] sm:$0xff] %v1480
    %1505 = vst [vmem:[#allocation3 + $0x70] sm:$0xff] %v1485
    %1506 = vst [vmem:[#allocation3 + $0x78] sm:$0xff] %v1488
    %v1507 = vpack.c.bf16 %v1311, %v1308
    %v1508 = vpack.c.bf16 %v1319, %v1316
    %v1509 = vpack.c.bf16 %v1327, %v1324
    %v1510 = vpack.c.bf16 %v1335, %v1332
    %v1511 = vpack.c.bf16 %v1343, %v1340
    %v1512 = vpack.c.bf16 %v1351, %v1348
    %v1513 = vpack.c.bf16 %v1359, %v1356
    %v1514 = vpack.c.bf16 %v1367, %v1364
    %1515 = vmatprep.subr.bf16.mxu0 0
    %1516 = vmatpush1.bf16.xpose.msra.mxu0 %v1241
    %1517 = vmatprep.subr.bf16.mxu0 0
    %1518 = vmatpush1.bf16.xpose.msra.mxu0 %v1242
    %1519 = vmatprep.subr.bf16.mxu0 0
    %1520 = vmatpush1.bf16.xpose.msra.mxu0 %v1243
    %1521 = vmatprep.subr.bf16.mxu0 0
    %1522 = vmatpush1.bf16.xpose.msra.mxu0 %v1244
    %1523 = vmatprep.subr.bf16.mxu0 0
    %1524 = vmatpush1.bf16.xpose.msra.mxu0 %v1245
    %1525 = vmatprep.subr.bf16.mxu0 0
    %1526 = vmatpush1.bf16.xpose.msra.mxu0 %v1246
    %1527 = vmatprep.subr.bf16.mxu0 0
    %1528 = vmatpush1.bf16.xpose.msra.mxu0 %v1247
    %1529 = vmatprep.subr.bf16.mxu0 0
    %1530 = vmatpush1.bf16.xpose.msra.mxu0 %v1248
    %1531 = vmatprep.subr.bf16.mxu0 0
    %1532 = vmatpush1.bf16.xpose.msra.mxu0 0
    %1533 = vmatprep.subr.bf16.mxu0 0
    %1534 = vmatpush1.bf16.xpose.msra.mxu0 0
    %1535 = vmatprep.subr.bf16.mxu0 0
    %1536 = vmatpush1.bf16.xpose.msra.mxu0 0
    %1537 = vmatprep.subr.bf16.mxu0 0
    %1538 = vmatpush1.bf16.xpose.msra.mxu0 0
    %1539 = vmatprep.subr.bf16.mxu0 0
    %1540 = vmatpush1.bf16.xpose.msra.mxu0 0
    %1541 = vmatprep.subr.bf16.mxu0 0
    %1542 = vmatpush1.bf16.xpose.msra.mxu0 0
    %1543 = vmatprep.subr.bf16.mxu0 0
    %1544 = vmatpush1.bf16.xpose.msra.mxu0 0
    %1545 = vmatprep.subr.bf16.mxu0 0
    %1546 = vmatpush1.bf16.xpose.msra.mxu0 0
    %1547 = vmatprep.mubr.bf16.mxu0 0
    %1548 = vmatmul.mubr.bf16.gmra.mrb[0].mxu0 %v1507
    %v1549 = vpop.f32.mrb[0].mxu0
    %v1550 = vadd.f32 0.0, %v1549
    %v1551 = vpop.f32.mrb[0].mxu0
    %v1552 = vpop.f32.mrb[0].mxu0
    %v1553 = vadd.f32 0.0, %v1552
    %v1554 = vpop.f32.mrb[0].mxu0
    %1555 = vmatprep.mubr.bf16.mxu0 0
    %1556 = vmatmul.mubr.bf16.gmra.mrb[0].mxu0 %v1508
    %v1557 = vpop.f32.mrb[0].mxu0
    %v1558 = vadd.f32 0.0, %v1557
    %v1559 = vpop.f32.mrb[0].mxu0
    %v1560 = vpop.f32.mrb[0].mxu0
    %v1561 = vadd.f32 0.0, %v1560
    %v1562 = vpop.f32.mrb[0].mxu0
    %1563 = vmatprep.mubr.bf16.mxu0 0
    %1564 = vmatmul.mubr.bf16.gmra.mrb[0].mxu0 %v1509
    %v1565 = vpop.f32.mrb[0].mxu0
    %v1566 = vadd.f32 0.0, %v1565
    %v1567 = vpop.f32.mrb[0].mxu0
    %v1568 = vpop.f32.mrb[0].mxu0
    %v1569 = vadd.f32 0.0, %v1568
    %v1570 = vpop.f32.mrb[0].mxu0
    %1571 = vmatprep.mubr.bf16.mxu0 0
    %1572 = vmatmul.mubr.bf16.gmra.mrb[0].mxu0 %v1510
    %v1573 = vpop.f32.mrb[0].mxu0
    %v1574 = vadd.f32 0.0, %v1573
    %v1575 = vpop.f32.mrb[0].mxu0
    %v1576 = vpop.f32.mrb[0].mxu0
    %v1577 = vadd.f32 0.0, %v1576
    %v1578 = vpop.f32.mrb[0].mxu0
    %1579 = vmatprep.mubr.bf16.mxu0 0
    %1580 = vmatmul.mubr.bf16.gmra.mrb[0].mxu0 %v1511
    %v1581 = vpop.f32.mrb[0].mxu0
    %v1582 = vadd.f32 0.0, %v1581
    %v1583 = vpop.f32.mrb[0].mxu0
    %v1584 = vpop.f32.mrb[0].mxu0
    %v1585 = vadd.f32 0.0, %v1584
    %v1586 = vpop.f32.mrb[0].mxu0
    %1587 = vmatprep.mubr.bf16.mxu0 0
    %1588 = vmatmul.mubr.bf16.gmra.mrb[0].mxu0 %v1512
    %v1589 = vpop.f32.mrb[0].mxu0
    %v1590 = vadd.f32 0.0, %v1589
    %v1591 = vpop.f32.mrb[0].mxu0
    %v1592 = vpop.f32.mrb[0].mxu0
    %v1593 = vadd.f32 0.0, %v1592
    %v1594 = vpop.f32.mrb[0].mxu0
    %1595 = vmatprep.mubr.bf16.mxu0 0
    %1596 = vmatmul.mubr.bf16.gmra.mrb[0].mxu0 %v1513
    %v1597 = vpop.f32.mrb[0].mxu0
    %v1598 = vadd.f32 0.0, %v1597
    %v1599 = vpop.f32.mrb[0].mxu0
    %v1600 = vpop.f32.mrb[0].mxu0
    %v1601 = vadd.f32 0.0, %v1600
    %v1602 = vpop.f32.mrb[0].mxu0
    %1603 = vmatprep.mubr.bf16.mxu0 0
    %1604 = vmatmul.mubr.bf16.gmra.mrb[0].mxu0 %v1514
    %v1605 = vpop.f32.mrb[0].mxu0
    %v1606 = vadd.f32 0.0, %v1605
    %v1607 = vpop.f32.mrb[0].mxu0
    %v1608 = vpop.f32.mrb[0].mxu0
    %v1609 = vadd.f32 0.0, %v1608
    %v1610 = vpop.f32.mrb[0].mxu0
    %1611 = vdwg.mxu0
    %1612 = vst [vmem:[#allocation2] sm:$0xff] %v1550
    %1613 = vst [vmem:[#allocation2 + $0x8] sm:$0xff] %v1553
    %1614 = vst [vmem:[#allocation2 + $0x10] sm:$0xff] %v1558
    %1615 = vst [vmem:[#allocation2 + $0x18] sm:$0xff] %v1561
    %1616 = vst [vmem:[#allocation2 + $0x20] sm:$0xff] %v1566
    %1617 = vst [vmem:[#allocation2 + $0x28] sm:$0xff] %v1569
    %1618 = vst [vmem:[#allocation2 + $0x30] sm:$0xff] %v1574
    %1619 = vst [vmem:[#allocation2 + $0x38] sm:$0xff] %v1577
    %1620 = vst [vmem:[#allocation2 + $0x40] sm:$0xff] %v1582
    %1621 = vst [vmem:[#allocation2 + $0x48] sm:$0xff] %v1585
    %1622 = vst [vmem:[#allocation2 + $0x50] sm:$0xff] %v1590
    %1623 = vst [vmem:[#allocation2 + $0x58] sm:$0xff] %v1593
    %1624 = vst [vmem:[#allocation2 + $0x60] sm:$0xff] %v1598
    %1625 = vst [vmem:[#allocation2 + $0x68] sm:$0xff] %v1601
    %1626 = vst [vmem:[#allocation2 + $0x70] sm:$0xff] %v1606
    %1627 = vst [vmem:[#allocation2 + $0x78] sm:$0xff] %v1609
    %v1628 = vld [vmem:[#allocation10] sm:$0xff]
    %v1629 = vld [vmem:[#allocation10 + $0x8] sm:$0xff]
    %v1630 = vld [vmem:[#allocation10 + $0x10] sm:$0xff]
    %v1631 = vld [vmem:[#allocation10 + $0x18] sm:$0xff]
    %1632 = vst.msk [vmem:[#allocation4] sm:$0xff] %vm97, %v1628
    %1633 = vst.msk [vmem:[#allocation4 + $0x8] sm:$0xff] %vm97, %v1629
    %1634 = vst.msk [vmem:[#allocation4 + $0x10] sm:$0xff] %vm97, %v1630
    %1635 = vst.msk [vmem:[#allocation4 + $0x18] sm:$0xff] %vm97, %v1631
    %v1636 = vld [vmem:[#allocation2] sm:$0xff]
    %v1637 = vld [vmem:[#allocation2 + $0x8] sm:$0xff]
    %v1638 = vld [vmem:[#allocation2 + $0x10] sm:$0xff]
    %v1639 = vld [vmem:[#allocation2 + $0x18] sm:$0xff]
    %v1640 = vld [vmem:[#allocation2 + $0x20] sm:$0xff]
    %v1641 = vld [vmem:[#allocation2 + $0x28] sm:$0xff]
    %v1642 = vld [vmem:[#allocation2 + $0x30] sm:$0xff]
    %v1643 = vld [vmem:[#allocation2 + $0x38] sm:$0xff]
    %v1644 = vld [vmem:[#allocation2 + $0x40] sm:$0xff]
    %v1645 = vld [vmem:[#allocation2 + $0x48] sm:$0xff]
    %v1646 = vld [vmem:[#allocation2 + $0x50] sm:$0xff]
    %v1647 = vld [vmem:[#allocation2 + $0x58] sm:$0xff]
    %v1648 = vld [vmem:[#allocation2 + $0x60] sm:$0xff]
    %v1649 = vld [vmem:[#allocation2 + $0x68] sm:$0xff]
    %v1650 = vld [vmem:[#allocation2 + $0x70] sm:$0xff]
    %v1651 = vld [vmem:[#allocation2 + $0x78] sm:$0xff]
    %v1652 = vld [vmem:[#allocation4] sm:$0xff]
    %v1653 = vld [vmem:[#allocation4 + $0x8] sm:$0xff]
    %v1654 = vld [vmem:[#allocation4 + $0x10] sm:$0xff]
    %v1655 = vld [vmem:[#allocation4 + $0x18] sm:$0xff]
    %v1656 = vld [vmem:[#allocation4 + $0x20] sm:$0xff]
    %v1657 = vld [vmem:[#allocation4 + $0x28] sm:$0xff]
    %v1658 = vld [vmem:[#allocation4 + $0x30] sm:$0xff]
    %v1659 = vld [vmem:[#allocation4 + $0x38] sm:$0xff]
    %v1660 = vld [vmem:[#allocation4 + $0x40] sm:$0xff]
    %v1661 = vld [vmem:[#allocation4 + $0x48] sm:$0xff]
    %v1662 = vld [vmem:[#allocation4 + $0x50] sm:$0xff]
    %v1663 = vld [vmem:[#allocation4 + $0x58] sm:$0xff]
    %v1664 = vld [vmem:[#allocation4 + $0x60] sm:$0xff]
    %v1665 = vld [vmem:[#allocation4 + $0x68] sm:$0xff]
    %v1666 = vld [vmem:[#allocation4 + $0x70] sm:$0xff]
    %v1667 = vld [vmem:[#allocation4 + $0x78] sm:$0xff]
    %v1668 = vmul.f32 %v1636, %v1652
    %v1669 = vmul.f32 %v1637, %v1653
    %v1670 = vmul.f32 %v1638, %v1654
    %v1671 = vmul.f32 %v1639, %v1655
    %v1672 = vmul.f32 %v1640, %v1656
    %v1673 = vmul.f32 %v1641, %v1657
    %v1674 = vmul.f32 %v1642, %v1658
    %v1675 = vmul.f32 %v1643, %v1659
    %v1676 = vmul.f32 %v1644, %v1660
    %v1677 = vmul.f32 %v1645, %v1661
    %v1678 = vmul.f32 %v1646, %v1662
    %v1679 = vmul.f32 %v1647, %v1663
    %v1680 = vmul.f32 %v1648, %v1664
    %v1681 = vmul.f32 %v1649, %v1665
    %v1682 = vmul.f32 %v1650, %v1666
    %v1683 = vmul.f32 %v1651, %v1667
    %1684 = vst.msk [vmem:[#allocation14] sm:$0xff] %vm97, %v1668
    %1685 = vst.msk [vmem:[#allocation14 + $0x8] sm:$0xff] %vm97, %v1669
    %1686 = vst.msk [vmem:[#allocation14 + $0x10] sm:$0xff] %vm97, %v1670
    %1687 = vst.msk [vmem:[#allocation14 + $0x18] sm:$0xff] %vm97, %v1671
    %v1688 = vld [vmem:[#allocation3] sm:$0xff]
    %v1689 = vld [vmem:[#allocation3 + $0x8] sm:$0xff]
    %v1690 = vld [vmem:[#allocation3 + $0x10] sm:$0xff]
    %v1691 = vld [vmem:[#allocation3 + $0x18] sm:$0xff]
    %1692 = vst.msk [vmem:[#allocation12] sm:$0xff] %vm97, %v1688
    %1693 = vst.msk [vmem:[#allocation12 + $0x8] sm:$0xff] %vm97, %v1689
    %1694 = vst.msk [vmem:[#allocation12 + $0x10] sm:$0xff] %vm97, %v1690
    %1695 = vst.msk [vmem:[#allocation12 + $0x18] sm:$0xff] %vm97, %v1691
    %v1696 = vld [vmem:[#allocation3] sm:$0xff]
    %v1697 = vld [vmem:[#allocation3 + $0x8] sm:$0xff]
    %v1698 = vld [vmem:[#allocation3 + $0x10] sm:$0xff]
    %v1699 = vld [vmem:[#allocation3 + $0x18] sm:$0xff]
    %v1700 = vld [vmem:[#allocation3 + $0x20] sm:$0xff]
    %v1701 = vld [vmem:[#allocation3 + $0x28] sm:$0xff]
    %v1702 = vld [vmem:[#allocation3 + $0x30] sm:$0xff]
    %v1703 = vld [vmem:[#allocation3 + $0x38] sm:$0xff]
    %v1704 = vld [vmem:[#allocation3 + $0x40] sm:$0xff]
    %v1705 = vld [vmem:[#allocation3 + $0x48] sm:$0xff]
    %v1706 = vld [vmem:[#allocation3 + $0x50] sm:$0xff]
    %v1707 = vld [vmem:[#allocation3 + $0x58] sm:$0xff]
    %v1708 = vld [vmem:[#allocation3 + $0x60] sm:$0xff]
    %v1709 = vld [vmem:[#allocation3 + $0x68] sm:$0xff]
    %v1710 = vld [vmem:[#allocation3 + $0x70] sm:$0xff]
    %v1711 = vld [vmem:[#allocation3 + $0x78] sm:$0xff]
    %v1712 = vpack.c.bf16 %v1697, %v1696
    %v1713 = vpack.c.bf16 %v1699, %v1698
    %v1714 = vpack.c.bf16 %v1701, %v1700
    %v1715 = vpack.c.bf16 %v1703, %v1702
    %v1716 = vpack.c.bf16 %v1705, %v1704
    %v1717 = vpack.c.bf16 %v1707, %v1706
    %v1718 = vpack.c.bf16 %v1709, %v1708
    %v1719 = vpack.c.bf16 %v1711, %v1710
    %v1720 = vpack.c.bf16 %v1669, %v1668
    %v1721 = vpack.c.bf16 %v1671, %v1670
    %v1722 = vpack.c.bf16 %v1673, %v1672
    %v1723 = vpack.c.bf16 %v1675, %v1674
    %v1724 = vpack.c.bf16 %v1677, %v1676
    %v1725 = vpack.c.bf16 %v1679, %v1678
    %v1726 = vpack.c.bf16 %v1681, %v1680
    %v1727 = vpack.c.bf16 %v1683, %v1682
    %1728 = vxpose.xlu0.c.b16.start [1/8] %v1712, 128
    %1729 = vxpose.xlu0.c.b16.cont [2/8] %v1713, 128
    %1730 = vxpose.xlu0.c.b16.cont [3/8] %v1714, 128
    %1731 = vxpose.xlu0.c.b16.cont [4/8] %v1715, 128
    %1732 = vxpose.xlu0.c.b16.cont [5/8] %v1716, 128
    %1733 = vxpose.xlu0.c.b16.cont [6/8] %v1717, 128
    %1734 = vxpose.xlu0.c.b16.cont [7/8] %v1718, 128
    %1735 = vxpose.xlu0.c.b16.end [8/8] %v1719, 128
    %v1736 = vpop.trf.xlu0
    %v1737 = vpop.trf.xlu0
    %v1738 = vpop.trf.xlu0
    %v1739 = vpop.trf.xlu0
    %v1740 = vpop.trf.xlu0
    %v1741 = vpop.trf.xlu0
    %v1742 = vpop.trf.xlu0
    %v1743 = vpop.trf.xlu0
    %1744 = vmatprep.subr.bf16.mxu0 0
    %1745 = vmatpush1.bf16.msra.mxu0 %v1720
    %1746 = vmatprep.subr.bf16.mxu0 0
    %1747 = vmatpush1.bf16.msra.mxu0 %v1721
    %1748 = vmatprep.subr.bf16.mxu0 0
    %1749 = vmatpush1.bf16.msra.mxu0 %v1722
    %1750 = vmatprep.subr.bf16.mxu0 0
    %1751 = vmatpush1.bf16.msra.mxu0 %v1723
    %1752 = vmatprep.subr.bf16.mxu0 0
    %1753 = vmatpush1.bf16.msra.mxu0 %v1724
    %1754 = vmatprep.subr.bf16.mxu0 0
    %1755 = vmatpush1.bf16.msra.mxu0 %v1725
    %1756 = vmatprep.subr.bf16.mxu0 0
    %1757 = vmatpush1.bf16.msra.mxu0 %v1726
    %1758 = vmatprep.subr.bf16.mxu0 0
    %1759 = vmatpush1.bf16.msra.mxu0 %v1727
    %1760 = vmatprep.subr.bf16.mxu0 0
    %1761 = vmatpush1.bf16.msra.mxu0 0
    %1762 = vmatprep.subr.bf16.mxu0 0
    %1763 = vmatpush1.bf16.msra.mxu0 0
    %1764 = vmatprep.subr.bf16.mxu0 0
    %1765 = vmatpush1.bf16.msra.mxu0 0
    %1766 = vmatprep.subr.bf16.mxu0 0
    %1767 = vmatpush1.bf16.msra.mxu0 0
    %1768 = vmatprep.subr.bf16.mxu0 0
    %1769 = vmatpush1.bf16.msra.mxu0 0
    %1770 = vmatprep.subr.bf16.mxu0 0
    %1771 = vmatpush1.bf16.msra.mxu0 0
    %1772 = vmatprep.subr.bf16.mxu0 0
    %1773 = vmatpush1.bf16.msra.mxu0 0
    %1774 = vmatprep.subr.bf16.mxu0 0
    %1775 = vmatpush1.bf16.msra.mxu0 0
    %1776 = vmatprep.mubr.bf16.mxu0 0
    %1777 = vmatmul.mubr.bf16.gmra.mrb[0].mxu0 %v1736
    %v1778 = vpop.f32.mrb[0].mxu0
    %v1779 = vadd.f32 0.0, %v1778
    %v1780 = vpop.f32.mrb[0].mxu0
    %v1781 = vpop.f32.mrb[0].mxu0
    %v1782 = vadd.f32 0.0, %v1781
    %v1783 = vpop.f32.mrb[0].mxu0
    %1784 = vmatprep.mubr.bf16.mxu0 0
    %1785 = vmatmul.mubr.bf16.gmra.mrb[0].mxu0 %v1737
    %v1786 = vpop.f32.mrb[0].mxu0
    %v1787 = vadd.f32 0.0, %v1786
    %v1788 = vpop.f32.mrb[0].mxu0
    %v1789 = vpop.f32.mrb[0].mxu0
    %v1790 = vadd.f32 0.0, %v1789
    %v1791 = vpop.f32.mrb[0].mxu0
    %1792 = vmatprep.mubr.bf16.mxu0 0
    %1793 = vmatmul.mubr.bf16.gmra.mrb[0].mxu0 %v1738
    %v1794 = vpop.f32.mrb[0].mxu0
    %v1795 = vadd.f32 0.0, %v1794
    %v1796 = vpop.f32.mrb[0].mxu0
    %v1797 = vpop.f32.mrb[0].mxu0
    %v1798 = vadd.f32 0.0, %v1797
    %v1799 = vpop.f32.mrb[0].mxu0
    %1800 = vmatprep.mubr.bf16.mxu0 0
    %1801 = vmatmul.mubr.bf16.gmra.mrb[0].mxu0 %v1739
    %v1802 = vpop.f32.mrb[0].mxu0
    %v1803 = vadd.f32 0.0, %v1802
    %v1804 = vpop.f32.mrb[0].mxu0
    %v1805 = vpop.f32.mrb[0].mxu0
    %v1806 = vadd.f32 0.0, %v1805
    %v1807 = vpop.f32.mrb[0].mxu0
    %1808 = vmatprep.mubr.bf16.mxu0 0
    %1809 = vmatmul.mubr.bf16.gmra.mrb[0].mxu0 %v1740
    %v1810 = vpop.f32.mrb[0].mxu0
    %v1811 = vadd.f32 0.0, %v1810
    %v1812 = vpop.f32.mrb[0].mxu0
    %v1813 = vpop.f32.mrb[0].mxu0
    %v1814 = vadd.f32 0.0, %v1813
    %v1815 = vpop.f32.mrb[0].mxu0
    %1816 = vmatprep.mubr.bf16.mxu0 0
    %1817 = vmatmul.mubr.bf16.gmra.mrb[0].mxu0 %v1741
    %v1818 = vpop.f32.mrb[0].mxu0
    %v1819 = vadd.f32 0.0, %v1818
    %v1820 = vpop.f32.mrb[0].mxu0
    %v1821 = vpop.f32.mrb[0].mxu0
    %v1822 = vadd.f32 0.0, %v1821
    %v1823 = vpop.f32.mrb[0].mxu0
    %1824 = vmatprep.mubr.bf16.mxu0 0
    %1825 = vmatmul.mubr.bf16.gmra.mrb[0].mxu0 %v1742
    %v1826 = vpop.f32.mrb[0].mxu0
    %v1827 = vadd.f32 0.0, %v1826
    %v1828 = vpop.f32.mrb[0].mxu0
    %v1829 = vpop.f32.mrb[0].mxu0
    %v1830 = vadd.f32 0.0, %v1829
    %v1831 = vpop.f32.mrb[0].mxu0
    %1832 = vmatprep.mubr.bf16.mxu0 0
    %1833 = vmatmul.mubr.bf16.gmra.mrb[0].mxu0 %v1743
    %v1834 = vpop.f32.mrb[0].mxu0
    %v1835 = vadd.f32 0.0, %v1834
    %v1836 = vpop.f32.mrb[0].mxu0
    %v1837 = vpop.f32.mrb[0].mxu0
    %v1838 = vadd.f32 0.0, %v1837
    %v1839 = vpop.f32.mrb[0].mxu0
    %1840 = vdwg.mxu0
    %v1841 = vpack.c.bf16 %v1782, %v1779
    %v1842 = vpack.c.bf16 %v1790, %v1787
    %v1843 = vpack.c.bf16 %v1798, %v1795
    %v1844 = vpack.c.bf16 %v1806, %v1803
    %v1845 = vpack.c.bf16 %v1814, %v1811
    %v1846 = vpack.c.bf16 %v1822, %v1819
    %v1847 = vpack.c.bf16 %v1830, %v1827
    %v1848 = vpack.c.bf16 %v1838, %v1835
    %1849 = vmatprep.subr.bf16.mxu0 0
    %1850 = vmatpush1.bf16.msra.mxu0 %v1712
    %1851 = vmatprep.subr.bf16.mxu0 0
    %1852 = vmatpush1.bf16.msra.mxu0 %v1713
    %1853 = vmatprep.subr.bf16.mxu0 0
    %1854 = vmatpush1.bf16.msra.mxu0 %v1714
    %1855 = vmatprep.subr.bf16.mxu0 0
    %1856 = vmatpush1.bf16.msra.mxu0 %v1715
    %1857 = vmatprep.subr.bf16.mxu0 0
    %1858 = vmatpush1.bf16.msra.mxu0 %v1716
    %1859 = vmatprep.subr.bf16.mxu0 0
    %1860 = vmatpush1.bf16.msra.mxu0 %v1717
    %1861 = vmatprep.subr.bf16.mxu0 0
    %1862 = vmatpush1.bf16.msra.mxu0 %v1718
    %1863 = vmatprep.subr.bf16.mxu0 0
    %1864 = vmatpush1.bf16.msra.mxu0 %v1719
    %1865 = vmatprep.subr.bf16.mxu0 0
    %1866 = vmatpush1.bf16.msra.mxu0 0
    %1867 = vmatprep.subr.bf16.mxu0 0
    %1868 = vmatpush1.bf16.msra.mxu0 0
    %1869 = vmatprep.subr.bf16.mxu0 0
    %1870 = vmatpush1.bf16.msra.mxu0 0
    %1871 = vmatprep.subr.bf16.mxu0 0
    %1872 = vmatpush1.bf16.msra.mxu0 0
    %1873 = vmatprep.subr.bf16.mxu0 0
    %1874 = vmatpush1.bf16.msra.mxu0 0
    %1875 = vmatprep.subr.bf16.mxu0 0
    %1876 = vmatpush1.bf16.msra.mxu0 0
    %1877 = vmatprep.subr.bf16.mxu0 0
    %1878 = vmatpush1.bf16.msra.mxu0 0
    %1879 = vmatprep.subr.bf16.mxu0 0
    %1880 = vmatpush1.bf16.msra.mxu0 0
    %1881 = vmatprep.mubr.bf16.mxu0 0
    %1882 = vmatmul.mubr.bf16.gmra.mrb[0].mxu0 %v1841
    %v1883 = vpop.f32.mrb[0].mxu0
    %v1884 = vadd.f32 0.0, %v1883
    %v1885 = vpop.f32.mrb[0].mxu0
    %v1886 = vpop.f32.mrb[0].mxu0
    %v1887 = vadd.f32 0.0, %v1886
    %v1888 = vpop.f32.mrb[0].mxu0
    %1889 = vmatprep.mubr.bf16.mxu0 0
    %1890 = vmatmul.mubr.bf16.gmra.mrb[0].mxu0 %v1842
    %v1891 = vpop.f32.mrb[0].mxu0
    %v1892 = vadd.f32 0.0, %v1891
    %v1893 = vpop.f32.mrb[0].mxu0
    %v1894 = vpop.f32.mrb[0].mxu0
    %v1895 = vadd.f32 0.0, %v1894
    %v1896 = vpop.f32.mrb[0].mxu0
    %1897 = vmatprep.mubr.bf16.mxu0 0
    %1898 = vmatmul.mubr.bf16.gmra.mrb[0].mxu0 %v1843
    %v1899 = vpop.f32.mrb[0].mxu0
    %v1900 = vpop.f32.mrb[0].mxu0
    %v1901 = vpop.f32.mrb[0].mxu0
    %v1902 = vpop.f32.mrb[0].mxu0
    %1903 = vmatprep.mubr.bf16.mxu0 0
    %1904 = vmatmul.mubr.bf16.gmra.mrb[0].mxu0 %v1844
    %v1905 = vpop.f32.mrb[0].mxu0
    %v1906 = vpop.f32.mrb[0].mxu0
    %v1907 = vpop.f32.mrb[0].mxu0
    %v1908 = vpop.f32.mrb[0].mxu0
    %1909 = vmatprep.mubr.bf16.mxu0 0
    %1910 = vmatmul.mubr.bf16.gmra.mrb[0].mxu0 %v1845
    %v1911 = vpop.f32.mrb[0].mxu0
    %v1912 = vpop.f32.mrb[0].mxu0
    %v1913 = vpop.f32.mrb[0].mxu0
    %v1914 = vpop.f32.mrb[0].mxu0
    %1915 = vmatprep.mubr.bf16.mxu0 0
    %1916 = vmatmul.mubr.bf16.gmra.mrb[0].mxu0 %v1846
    %v1917 = vpop.f32.mrb[0].mxu0
    %v1918 = vpop.f32.mrb[0].mxu0
    %v1919 = vpop.f32.mrb[0].mxu0
    %v1920 = vpop.f32.mrb[0].mxu0
    %1921 = vmatprep.mubr.bf16.mxu0 0
    %1922 = vmatmul.mubr.bf16.gmra.mrb[0].mxu0 %v1847
    %v1923 = vpop.f32.mrb[0].mxu0
    %v1924 = vpop.f32.mrb[0].mxu0
    %v1925 = vpop.f32.mrb[0].mxu0
    %v1926 = vpop.f32.mrb[0].mxu0
    %1927 = vmatprep.mubr.bf16.mxu0 0
    %1928 = vmatmul.mubr.bf16.gmra.mrb[0].mxu0 %v1848
    %v1929 = vpop.f32.mrb[0].mxu0
    %v1930 = vpop.f32.mrb[0].mxu0
    %v1931 = vpop.f32.mrb[0].mxu0
    %v1932 = vpop.f32.mrb[0].mxu0
    %1933 = vdwg.mxu0
    %1934 = vst.msk [vmem:[#allocation11] sm:$0xff] %vm97, %v1884
    %1935 = vst.msk [vmem:[#allocation11 + $0x8] sm:$0xff] %vm97, %v1887
    %1936 = vst.msk [vmem:[#allocation11 + $0x10] sm:$0xff] %vm97, %v1892
    %1937 = vst.msk [vmem:[#allocation11 + $0x18] sm:$0xff] %vm97, %v1895
    // Predicated region
    $region26: #{tpu_custom_call.1} parent=1 // pred_check
      _
    $region27: #{tpu_custom_call.1} parent=1 // pred_check_branch
      %1939 = sbr.rel (0) target = $region29
    $region28: #{tpu_custom_call.1} parent=1 // pred_region
      %s1941 = ssub.s32 512, 512
      %1942 = vsyncadd [#allocation7], %s1941
      %s1943 = sshll.u32 [#allocation11], 4
      %s1944 = int_to_ptr.vmem [resolvable:$true] %s1943
      %1949 = dma.vmem_to_hbm [thread:$0]  %s1944, 512, %s3, [#allocation7], 128, 128, 8
    $region29: #{tpu_custom_call.1} parent=1 // pred_fallthru
      _
    // Predicated region
    $region30: #{tpu_custom_call.1} parent=1 // pred_check
      _
    $region31: #{tpu_custom_call.1} parent=1 // pred_check_branch
      %1951 = sbr.rel (0) target = $region33
    $region32: #{tpu_custom_call.1} parent=1 // pred_region
      %s1953 = ssub.s32 512, 512
      %1954 = vsyncadd [#allocation13], %s1953
      %s1955 = sshll.u32 [#allocation12], 4
      %s1956 = int_to_ptr.vmem [resolvable:$true] %s1955
      %1961 = dma.vmem_to_hbm [thread:$0]  %s1956, 512, %s4, [#allocation13], 128, 128, 8
    $region33: #{tpu_custom_call.1} parent=1 // pred_fallthru
      _
    // Predicated region
    $region34: #{tpu_custom_call.1} parent=1 // pred_check
      _
    $region35: #{tpu_custom_call.1} parent=1 // pred_check_branch
      %1963 = sbr.rel (0) target = $region37
    $region36: #{tpu_custom_call.1} parent=1 // pred_region
      %s1965 = ssub.s32 512, 512
      %1966 = vsyncadd [#allocation13], %s1965
      %s1967 = sshll.u32 [#allocation14], 4
      %s1968 = int_to_ptr.vmem [resolvable:$true] %s1967
      %1973 = dma.vmem_to_hbm [thread:$0]  %s1968, 512, %s5, [#allocation13], 128, 128, 8
    $region37: #{tpu_custom_call.1} parent=1 // pred_fallthru
      _
    // Predicated region
    $region38: #{tpu_custom_call.1} parent=1 // pred_check
      _
    $region39: #{tpu_custom_call.1} parent=1 // pred_check_branch
      %1975 = sbr.rel (0) target = $region41
    $region40: #{tpu_custom_call.1} parent=1 // pred_region
      %1976 = dma.done [#allocation7], 512
    $region41: #{tpu_custom_call.1} parent=1 // pred_fallthru
      _
    // Predicated region
    $region42: #{tpu_custom_call.1} parent=1 // pred_check
      _
    $region43: #{tpu_custom_call.1} parent=1 // pred_check_branch
      %1978 = sbr.rel (0) target = $region45
    $region44: #{tpu_custom_call.1} parent=1 // pred_region
      %1979 = dma.done [#allocation13], 512
    $region45: #{tpu_custom_call.1} parent=1 // pred_fallthru
      _
    // Predicated region
    $region46: #{tpu_custom_call.1} parent=1 // pred_check
      _
    $region47: #{tpu_custom_call.1} parent=1 // pred_check_branch
      %1981 = sbr.rel (0) target = $region49
    $region48: #{tpu_custom_call.1} parent=1 // pred_region
      %1982 = dma.done [#allocation13], 512
    $region49: #{tpu_custom_call.1} parent=1 // pred_fallthru
      _
    %1983 = vsyncpa [#allocation6], 1
    %1984 = vsyncpa [#allocation9], 1
    %1985 = vsyncpa [#allocation7], 1
    %1986 = vsyncpa [#allocation13], 1

</llo_original>
